<compile_context>
chip_gen: v5e
topology: v5e:2x2
jax: 0.10.0
libtpu: 0.0.40
codegen_flags: <defaults>
</compile_context>

<pallas_src>
import jax
import jax.numpy as jnp
from jax import lax
from jax.experimental import pallas as pl
from jax.experimental.pallas import tpu as pltpu


# ----------------------------- small helpers ------------------------------ #

def _layernorm(x, gamma, beta, eps=1e-5):
    mu = jnp.mean(x, axis=-1, keepdims=True)
    var = jnp.mean((x - mu) ** 2, axis=-1, keepdims=True)
    return (x - mu) * lax.rsqrt(var + eps) * gamma + beta


def _silu(x):
    return x * jax.nn.sigmoid(x)


def _round_up(v, m):
    return -(-v // m) * m


# ------------------- fused forward as ONE Pallas kernel -------------------- #

def _make_fused_kernel(*, k, T, P, bb, n_feat, n_out, channels, has_ds):
    """Builds the fused kernel body. All metadata is static (closed over)."""
    n_blocks = len(channels)
    c_last = channels[-1]

    def kernel(*refs):
        it = iter(refs)
        x_ref = next(it)           # [bb, T, n_feat]   f32
        xp_ref = next(it)          # [bb, 1, n_out]    f32

        blk = []
        for ds in has_ds:
            w1, b1, w2, b2 = next(it), next(it), next(it), next(it)
            wd, bd = (next(it), next(it)) if ds else (None, None)
            blk.append((w1, b1, w2, b2, wd, bd))

        (w_pe, b_pe, g_pe, be_pe,
         w_h1, b_h1, g_a, be_a, g_s, be_s,
         w_a2, b_a2, w_s2, b_s2) = [next(it) for _ in range(14)]

        attw_ref = next(it)        # [bb, 1, n_out]  output
        smax_ref = next(it)        # [bb, 1, n_out]  output
        act_ref = next(it)         # [bb, P + T, C_max]  VMEM scratch (f32)

        # Zero the causal left-pad rows once; data rows are always fully
        # overwritten before being read.
        act_ref[:, :P, :] = jnp.zeros((bb, P, act_ref.shape[-1]), jnp.float32)

        # Stage the input into the padded scratch (write at offset, no concat
        # along the time axis, no host-side jnp.pad).
        c_in = n_feat
        act_ref[:, P:, :c_in] = x_ref[...].astype(jnp.float32)

        y = None
        for i, (w1, b1, w2, b2, wd, bd) in enumerate(blk):
            d = 2 ** i
            c_out = channels[i]
            last = i == n_blocks - 1

            # ---- conv1: k dilated causal taps fused into one matmul ----
            taps = [act_ref[:, P - (k - 1 - j) * d: P - (k - 1 - j) * d + T, :c_in]
                    .reshape(bb * T, c_in) for j in range(k)]
            x_res = taps[-1]                                  # unshifted input
            x_cat = jnp.concatenate(taps, axis=-1)
            h = jnp.dot(x_cat.astype(jnp.bfloat16), w1[...],
                        preferred_element_type=jnp.float32) + b1[...]
            h = jnp.maximum(h, 0.0)                           # ReLU; dropout=id

            # ---- conv2: stage h only for the shifted taps; the unshifted
            # tap reuses the register value of h (no redundant VMEM reload) ----
            act_ref[:, P:, :c_out] = h.reshape(bb, T, c_out)
            taps2 = [act_ref[:, P - (k - 1 - j) * d: P - (k - 1 - j) * d + T, :c_out]
                     .reshape(bb * T, c_out) for j in range(k - 1)] + [h]
            h_cat = jnp.concatenate(taps2, axis=-1)
            out2 = jnp.dot(h_cat.astype(jnp.bfloat16), w2[...],
                           preferred_element_type=jnp.float32) + b2[...]
            out2 = jnp.maximum(out2, 0.0)                     # ReLU; dropout=id

            # ---- residual (1x1 conv iff C_in != C_out) + final ReLU ----
            if wd is not None:
                res = jnp.dot(x_res.astype(jnp.bfloat16), wd[...],
                              preferred_element_type=jnp.float32) + bd[...]
            else:
                res = x_res
            y = jnp.maximum(out2 + res, 0.0)                  # [bb*T, c_out]

            # Stage block output only if another block will read it.
            if not last:
                act_ref[:, P:, :c_out] = y.reshape(bb, T, c_out)
            c_in = c_out

        # ---- tempmaxpool over the full time axis ----
        feat = jnp.max(y.reshape(bb, T, c_in), axis=1)        # [bb, C_last]

        # ---- prob_encoder: Linear -> LayerNorm -> SiLU (dropout = id) ----
        xp = xp_ref[...].reshape(bb, n_out)
        pe = jnp.dot(xp.astype(jnp.bfloat16), w_pe[...],
                     preferred_element_type=jnp.float32) + b_pe[...]
        pe = _silu(_layernorm(pe, g_pe[...], be_pe[...]))

        combined = jnp.concatenate([feat, pe], axis=-1)       # [bb, 2*C_last]
        cb = combined.astype(jnp.bfloat16)

        # ---- first Linear of attention + score heads fused (same input) ----
        h1 = jnp.dot(cb, w_h1[...], preferred_element_type=jnp.float32) + b_h1[...]
        a = _silu(_layernorm(h1[:, :c_last], g_a[...], be_a[...]))
        s = _silu(_layernorm(h1[:, c_last:], g_s[...], be_s[...]))

        # ---- attention head tail: Linear -> sigmoid ----
        a = jnp.dot(a.astype(jnp.bfloat16), w_a2[...],
                    preferred_element_type=jnp.float32) + b_a2[...]
        attw_ref[...] = jax.nn.sigmoid(a).reshape(bb, 1, n_out)

        # ---- score head tail: Linear -> softmax ----
        s = jnp.dot(s.astype(jnp.bfloat16), w_s2[...],
                    preferred_element_type=jnp.float32) + b_s2[...]
        s = s - jnp.max(s, axis=-1, keepdims=True)
        e = jnp.exp(s)
        inv = pl.reciprocal(jnp.sum(e, axis=-1, keepdims=True), approx=True)
        smax_ref[...] = (e * inv).reshape(bb, 1, n_out)

    return kernel


# ----------------------------- rebalance ----------------------------------- #
# Data-dependent iterative clamp loop (PortfolioTCN.rebalance). Scalar control
# flow with no clean Pallas equivalent; kept in plain JAX with lax.while_loop.
# TODO(synk): iteration cap (1000) added for safety (PyTorch loop is unbounded).

def rebalance_row(w, lb, ub):
    selected = (w > 0).astype(w.dtype)
    w = w * selected
    wc = jnp.clip(w, lb, ub)
    excess0 = jnp.sum(wc) - 1.0

    def cond(state):
        _, excess, done, it = state
        return (jnp.abs(excess) > 1e-6) & (~done) & (it < 1000)

    def body(state):
        wc, excess, done, it = state
        pos = excess > 0
        adj_mask = jnp.where(pos, wc > lb, wc < ub) & (selected == 1.0)
        any_adj = jnp.any(adj_mask)
        cnt = jnp.sum(adj_mask.astype(wc.dtype))
        delta = -excess / jnp.maximum(cnt, 1.0)
        wc_new = jnp.clip(jnp.where(adj_mask, wc + delta, wc), lb, ub)
        excess_new = jnp.sum(wc_new) - 1.0
        wc_out = jnp.where(any_adj, wc_new, wc)
        excess_out = jnp.where(any_adj, excess_new, excess)
        return wc_out, excess_out, ~any_adj, it + 1

    wc, _, _, _ = lax.while_loop(
        cond, body,
        (wc, excess0, jnp.array(False), jnp.array(0, jnp.int32)))
    return wc


# ----------------------------- full forward -------------------------------- #

def portfolio_tcn_with_prob_forward(params, x_returns, x_probs, *,
                                    kernel_size, n_select, lb, ub):
    x = x_returns.astype(jnp.float32)
    B, T, F = x.shape
    xp = x_probs[:, -1, :] if x_probs.ndim == 3 else x_probs
    xp = xp.astype(jnp.float32)
    N = xp.shape[-1]
    xp3 = xp.reshape(B, 1, N)

    blocks = params["tcn"]
    head = params["head"]
    channels = [bp["b1"].shape[-1] for bp in blocks]
    has_ds = [bp["wd"] is not None for bp in blocks]
    c_max = max([F] + channels)
    k = kernel_size
    p_max = (k - 1) * (2 ** (len(blocks) - 1))
    P = max(8, _round_up(p_max, 8))      # causal pad region, sublane aligned

    # Flat parameter list (downsample weights only where they exist).
    flat = []
    for bp in blocks:
        flat += [bp["w1"], bp["b1"], bp["w2"], bp["b2"]]
        if bp["wd"] is not None:
            flat += [bp["wd"], bp["bd"]]

    # Fuse the first Linear of the attention and score heads (same input):
    # weights concatenated along the output (lane) axis -> one matmul in-kernel.
    w_h1 = jnp.concatenate([head["w_a1"], head["w_s1"]], axis=1)   # [2C, 2C]
    b_h1 = jnp.concatenate([head["b_a1"], head["b_s1"]], axis=1)   # [1, 2C]
    flat += [head["w_pe"], head["b_pe"], head["g_pe"], head["be_pe"],
             w_h1, b_h1,
             head["g_a"], head["be_a"], head["g_s"], head["be_s"],
             head["w_a2"], head["b_a2"], head["w_s2"], head["b_s2"]]

    bb = 1                               # batch tile; grid shards over batch
    grid = (B // bb,)

    def batch_spec(shape):
        nz = len(shape) - 1
        return pl.BlockSpec((bb,) + tuple(shape[1:]),
                            lambda b, _nz=nz: (b,) + (0,) * _nz)

    def const_spec(arr):
        nd = arr.ndim
        return pl.BlockSpec(tuple(arr.shape), lambda b, _nd=nd: (0,) * _nd)

    in_specs = ([batch_spec(x.shape), batch_spec(xp3.shape)]
                + [const_spec(a) for a in flat])
    out_specs = [batch_spec((B, 1, N)), batch_spec((B, 1, N))]

    kernel = _make_fused_kernel(k=k, T=T, P=P, bb=bb, n_feat=F, n_out=N,
                                channels=channels, has_ds=has_ds)

    attw3, smax3 = pl.pallas_call(
        kernel,
        out_shape=(jax.ShapeDtypeStruct((B, 1, N), jnp.float32),
                   jax.ShapeDtypeStruct((B, 1, N), jnp.float32)),
        grid_spec=pltpu.PrefetchScalarGridSpec(
            num_scalar_prefetch=0,
            grid=grid,
            in_specs=in_specs,
            out_specs=out_specs,
            scratch_shapes=[pltpu.VMEM((bb, P + T, c_max), jnp.float32)]),
        compiler_params=pltpu.CompilerParams(
            dimension_semantics=("parallel",)),
    )(x, xp3, *flat)

    attw = attw3.reshape(B, N)
    smax = smax3.reshape(B, N)

    # top-k mask over attention weights (glue; topk/scatter not lowered in-kernel)
    _, idx = lax.top_k(attw, n_select)
    mask = jnp.zeros_like(attw).at[jnp.arange(B)[:, None], idx].set(1.0)

    masked = smax * mask
    normalized = masked / (jnp.sum(masked, axis=1, keepdims=True) + 1e-8)
    final = jax.vmap(lambda w: rebalance_row(w, lb, ub))(normalized)
    return final


# ----------------------------- parameter init ------------------------------ #

def init_params(key, n_feature, n_output, num_channels, kernel_size):
    C = num_channels[-1]
    keys = iter(jax.random.split(key, 64))

    def nrm(shape, std=0.01):
        return (std * jax.random.normal(next(keys), shape)).astype(jnp.float32)

    def lin(shape):  # [in, out]
        return (jax.random.normal(next(keys), shape)
                / jnp.sqrt(shape[0])).astype(jnp.float32)

    def conv_cat(cin, cout):
        # per-tap [k, cin, cout] (weight_norm folded) -> fused [k*cin, cout] bf16
        w = nrm((kernel_size, cin, cout))
        return w.reshape(kernel_size * cin, cout).astype(jnp.bfloat16)

    params = {"tcn": [], "head": {}}
    in_ch = n_feature
    for out_ch in num_channels:
        bp = {
            "w1": conv_cat(in_ch, out_ch),
            "b1": nrm((1, out_ch)),
            "w2": conv_cat(out_ch, out_ch),
            "b2": nrm((1, out_ch)),
            "wd": (nrm((in_ch, out_ch)).astype(jnp.bfloat16)
                   if in_ch != out_ch else None),
            "bd": nrm((1, out_ch)) if in_ch != out_ch else None,
        }
        params["tcn"].append(bp)
        in_ch = out_ch

    h = params["head"]
    h["w_pe"] = lin((n_output, C)).astype(jnp.bfloat16); h["b_pe"] = nrm((1, C))
    h["g_pe"] = jnp.ones((1, C), jnp.float32); h["be_pe"] = jnp.zeros((1, C), jnp.float32)
    h["w_a1"] = lin((2 * C, C)).astype(jnp.bfloat16); h["b_a1"] = nrm((1, C))
    h["g_a"] = jnp.ones((1, C), jnp.float32); h["be_a"] = jnp.zeros((1, C), jnp.float32)
    h["w_a2"] = lin((C, n_output)).astype(jnp.bfloat16); h["b_a2"] = nrm((1, n_output))
    h["w_s1"] = lin((2 * C, C)).astype(jnp.bfloat16); h["b_s1"] = nrm((1, C))
    h["g_s"] = jnp.ones((1, C), jnp.float32); h["be_s"] = jnp.zeros((1, C), jnp.float32)
    h["w_s2"] = lin((C, n_output)).astype(jnp.bfloat16); h["b_s2"] = nrm((1, n_output))
    return params


# --------------------------------- main ------------------------------------ #

if __name__ == "__main__":
    B = 2
    n_feature = 16          # == n_stocks
    n_output = 16
    num_channels = [32, 16]
    kernel_size = 2
    n_timestep = 8
    pred_len = 4
    n_select = 8
    lb, ub = 0.0, 0.1

    key = jax.random.PRNGKey(0)
    kp, kx, kq = jax.random.split(key, 3)

    params = init_params(kp, n_feature, n_output, num_channels, kernel_size)
    x_returns = 0.02 * jax.random.normal(kx, (B, n_timestep, n_feature),
                                         dtype=jnp.float32)
    x_probs = jax.random.uniform(kq, (B, pred_len, n_output), dtype=jnp.float32)

    weights = portfolio_tcn_with_prob_forward(
        params, x_returns, x_probs,
        kernel_size=kernel_size, n_select=n_select, lb=lb, ub=ub)
    weights = jax.block_until_ready(weights)

    assert weights.shape == (B, n_output)
    assert bool(jnp.all(jnp.isfinite(weights)))
    print("KERNEL_OK")
</pallas_src>

<mosaic_0001>
module attributes {stable_mosaic.version = 11 : i64} {
  func.func @kernel(%arg0: i32, %arg1: memref<1x8x16xf32, #tpu.memory_space<vmem>>, %arg2: memref<1x1x16xf32, #tpu.memory_space<vmem>>, %arg3: memref<32x32xbf16, #tpu.memory_space<vmem>>, %arg4: memref<1x32xf32, #tpu.memory_space<vmem>>, %arg5: memref<64x32xbf16, #tpu.memory_space<vmem>>, %arg6: memref<1x32xf32, #tpu.memory_space<vmem>>, %arg7: memref<16x32xbf16, #tpu.memory_space<vmem>>, %arg8: memref<1x32xf32, #tpu.memory_space<vmem>>, %arg9: memref<64x16xbf16, #tpu.memory_space<vmem>>, %arg10: memref<1x16xf32, #tpu.memory_space<vmem>>, %arg11: memref<32x16xbf16, #tpu.memory_space<vmem>>, %arg12: memref<1x16xf32, #tpu.memory_space<vmem>>, %arg13: memref<32x16xbf16, #tpu.memory_space<vmem>>, %arg14: memref<1x16xf32, #tpu.memory_space<vmem>>, %arg15: memref<16x16xbf16, #tpu.memory_space<vmem>>, %arg16: memref<1x16xf32, #tpu.memory_space<vmem>>, %arg17: memref<1x16xf32, #tpu.memory_space<vmem>>, %arg18: memref<1x16xf32, #tpu.memory_space<vmem>>, %arg19: memref<32x32xbf16, #tpu.memory_space<vmem>>, %arg20: memref<1x32xf32, #tpu.memory_space<vmem>>, %arg21: memref<1x16xf32, #tpu.memory_space<vmem>>, %arg22: memref<1x16xf32, #tpu.memory_space<vmem>>, %arg23: memref<1x16xf32, #tpu.memory_space<vmem>>, %arg24: memref<1x16xf32, #tpu.memory_space<vmem>>, %arg25: memref<16x16xbf16, #tpu.memory_space<vmem>>, %arg26: memref<1x16xf32, #tpu.memory_space<vmem>>, %arg27: memref<16x16xbf16, #tpu.memory_space<vmem>>, %arg28: memref<1x16xf32, #tpu.memory_space<vmem>>, %arg29: memref<1x1x16xf32, #tpu.memory_space<vmem>>, %arg30: memref<1x1x16xf32, #tpu.memory_space<vmem>>, %arg31: memref<1x16x32xf32, #tpu.memory_space<vmem>>) attributes {dimension_semantics = [#tpu.dimension_semantics<parallel>], iteration_bounds = array<i64: 2>, scalar_prefetch = 0 : i64, scratch_operands = 1 : i64, tpu.core_type = #tpu.core_type<tc>, window_params = [{transform_indices = @transform_0, window_bounds = array<i64: 1, 8, 16>}, {transform_indices = @transform_1, window_bounds = array<i64: 1, 1, 16>}, {pipeline_mode = #tpu.pipeline_mode<synchronous>, transform_indices = @transform_2, window_bounds = array<i64: 32, 32>}, {pipeline_mode = #tpu.pipeline_mode<synchronous>, transform_indices = @transform_3, window_bounds = array<i64: 1, 32>}, {pipeline_mode = #tpu.pipeline_mode<synchronous>, transform_indices = @transform_4, window_bounds = array<i64: 64, 32>}, {pipeline_mode = #tpu.pipeline_mode<synchronous>, transform_indices = @transform_5, window_bounds = array<i64: 1, 32>}, {pipeline_mode = #tpu.pipeline_mode<synchronous>, transform_indices = @transform_6, window_bounds = array<i64: 16, 32>}, {pipeline_mode = #tpu.pipeline_mode<synchronous>, transform_indices = @transform_7, window_bounds = array<i64: 1, 32>}, {pipeline_mode = #tpu.pipeline_mode<synchronous>, transform_indices = @transform_8, window_bounds = array<i64: 64, 16>}, {pipeline_mode = #tpu.pipeline_mode<synchronous>, transform_indices = @transform_9, window_bounds = array<i64: 1, 16>}, {pipeline_mode = #tpu.pipeline_mode<synchronous>, transform_indices = @transform_10, window_bounds = array<i64: 32, 16>}, {pipeline_mode = #tpu.pipeline_mode<synchronous>, transform_indices = @transform_11, window_bounds = array<i64: 1, 16>}, {pipeline_mode = #tpu.pipeline_mode<synchronous>, transform_indices = @transform_12, window_bounds = array<i64: 32, 16>}, {pipeline_mode = #tpu.pipeline_mode<synchronous>, transform_indices = @transform_13, window_bounds = array<i64: 1, 16>}, {pipeline_mode = #tpu.pipeline_mode<synchronous>, transform_indices = @transform_14, window_bounds = array<i64: 16, 16>}, {pipeline_mode = #tpu.pipeline_mode<synchronous>, transform_indices = @transform_15, window_bounds = array<i64: 1, 16>}, {pipeline_mode = #tpu.pipeline_mode<synchronous>, transform_indices = @transform_16, window_bounds = array<i64: 1, 16>}, {pipeline_mode = #tpu.pipeline_mode<synchronous>, transform_indices = @transform_17, window_bounds = array<i64: 1, 16>}, {pipeline_mode = #tpu.pipeline_mode<synchronous>, transform_indices = @transform_18, window_bounds = array<i64: 32, 32>}, {pipeline_mode = #tpu.pipeline_mode<synchronous>, transform_indices = @transform_19, window_bounds = array<i64: 1, 32>}, {pipeline_mode = #tpu.pipeline_mode<synchronous>, transform_indices = @transform_20, window_bounds = array<i64: 1, 16>}, {pipeline_mode = #tpu.pipeline_mode<synchronous>, transform_indices = @transform_21, window_bounds = array<i64: 1, 16>}, {pipeline_mode = #tpu.pipeline_mode<synchronous>, transform_indices = @transform_22, window_bounds = array<i64: 1, 16>}, {pipeline_mode = #tpu.pipeline_mode<synchronous>, transform_indices = @transform_23, window_bounds = array<i64: 1, 16>}, {pipeline_mode = #tpu.pipeline_mode<synchronous>, transform_indices = @transform_24, window_bounds = array<i64: 16, 16>}, {pipeline_mode = #tpu.pipeline_mode<synchronous>, transform_indices = @transform_25, window_bounds = array<i64: 1, 16>}, {pipeline_mode = #tpu.pipeline_mode<synchronous>, transform_indices = @transform_26, window_bounds = array<i64: 16, 16>}, {pipeline_mode = #tpu.pipeline_mode<synchronous>, transform_indices = @transform_27, window_bounds = array<i64: 1, 16>}, {transform_indices = @transform_28, window_bounds = array<i64: 1, 1, 16>}, {transform_indices = @transform_29, window_bounds = array<i64: 1, 1, 16>}]} {
    %cst = arith.constant 0.000000e+00 : f32
    %0 = vector.broadcast %cst : f32 to vector<1x8x32xf32>
    %c0 = arith.constant 0 : index
    %c0_0 = arith.constant 0 : index
    %c0_1 = arith.constant 0 : index
    %1 = vector.load %arg31[%c0, %c0_0, %c0_1] : memref<1x16x32xf32, #tpu.memory_space<vmem>>, vector<1x8x32xf32>
    tpu.vector_store %arg31[%c0, %c0_0, %c0_1], %0 {strides = array<i32>} : memref<1x16x32xf32, #tpu.memory_space<vmem>>, vector<1x8x32xf32>,
    %c0_2 = arith.constant 0 : index
    %c0_3 = arith.constant 0 : index
    %c0_4 = arith.constant 0 : index
    %2 = vector.load %arg1[%c0_2, %c0_3, %c0_4] : memref<1x8x16xf32, #tpu.memory_space<vmem>>, vector<1x8x16xf32>
    %c0_5 = arith.constant 0 : index
    %c8 = arith.constant 8 : index
    %c0_6 = arith.constant 0 : index
    %3 = vector.load %arg31[%c0_5, %c8, %c0_6] : memref<1x16x32xf32, #tpu.memory_space<vmem>>, vector<1x8x16xf32>
    tpu.vector_store %arg31[%c0_5, %c8, %c0_6], %2 {strides = array<i32>} : memref<1x16x32xf32, #tpu.memory_space<vmem>>, vector<1x8x16xf32>,
    %c0_7 = arith.constant 0 : index
    %c7 = arith.constant 7 : index
    %c0_8 = arith.constant 0 : index
    %4 = vector.load %arg31[%c0_7, %c7, %c0_8] : memref<1x16x32xf32, #tpu.memory_space<vmem>>, vector<1x8x16xf32>
    %5 = vector.shape_cast %4 : vector<1x8x16xf32> to vector<8x16xf32>
    %c0_9 = arith.constant 0 : index
    %c8_10 = arith.constant 8 : index
    %c0_11 = arith.constant 0 : index
    %6 = vector.load %arg31[%c0_9, %c8_10, %c0_11] : memref<1x16x32xf32, #tpu.memory_space<vmem>>, vector<1x8x16xf32>
    %7 = vector.shape_cast %6 : vector<1x8x16xf32> to vector<8x16xf32>
    %8 = tpu.concatenate %5, %7 in 1 : vector<8x16xf32>, vector<8x16xf32> -> vector<8x32xf32>
    %9 = arith.truncf %8 : vector<8x32xf32> to vector<8x32xbf16>
    %c0_12 = arith.constant 0 : index
    %c0_13 = arith.constant 0 : index
    %10 = vector.load %arg3[%c0_12, %c0_13] : memref<32x32xbf16, #tpu.memory_space<vmem>>, vector<32x32xbf16>
    %cst_14 = arith.constant dense<0.000000e+00> : vector<8x32xf32>
    %11 = tpu.matmul %9, %10, %cst_14 {dimension_numbers = #tpu.dot_dimension_numbers<[1], [0], [0], [1], [0, 0, 1, 1], [], []>} : vector<8x32xbf16>, vector<32x32xbf16>, vector<8x32xf32> -> vector<8x32xf32>
    %c0_15 = arith.constant 0 : index
    %c0_16 = arith.constant 0 : index
    %12 = vector.load %arg4[%c0_15, %c0_16] : memref<1x32xf32, #tpu.memory_space<vmem>>, vector<1x32xf32>
    %13 = vector.broadcast %12 : vector<1x32xf32> to vector<8x32xf32>
    %14 = arith.addf %11, %13 : vector<8x32xf32>
    %cst_17 = arith.constant 0.000000e+00 : f32
    %15 = vector.broadcast %cst_17 : f32 to vector<8x32xf32>
    %16 = arith.maximumf %14, %15 : vector<8x32xf32>
    %17 = vector.shape_cast %16 : vector<8x32xf32> to vector<1x8x32xf32>
    %c0_18 = arith.constant 0 : index
    %c8_19 = arith.constant 8 : index
    %c0_20 = arith.constant 0 : index
    %18 = vector.load %arg31[%c0_18, %c8_19, %c0_20] : memref<1x16x32xf32, #tpu.memory_space<vmem>>, vector<1x8x32xf32>
    tpu.vector_store %arg31[%c0_18, %c8_19, %c0_20], %17 {strides = array<i32>} : memref<1x16x32xf32, #tpu.memory_space<vmem>>, vector<1x8x32xf32>,
    %c0_21 = arith.constant 0 : index
    %c7_22 = arith.constant 7 : index
    %c0_23 = arith.constant 0 : index
    %19 = vector.load %arg31[%c0_21, %c7_22, %c0_23] : memref<1x16x32xf32, #tpu.memory_space<vmem>>, vector<1x8x32xf32>
    %20 = vector.shape_cast %19 : vector<1x8x32xf32> to vector<8x32xf32>
    %21 = tpu.concatenate %20, %16 in 1 : vector<8x32xf32>, vector<8x32xf32> -> vector<8x64xf32>
    %22 = arith.truncf %21 : vector<8x64xf32> to vector<8x64xbf16>
    %c0_24 = arith.constant 0 : index
    %c0_25 = arith.constant 0 : index
    %23 = vector.load %arg5[%c0_24, %c0_25] : memref<64x32xbf16, #tpu.memory_space<vmem>>, vector<64x32xbf16>
    %cst_26 = arith.constant dense<0.000000e+00> : vector<8x32xf32>
    %24 = tpu.matmul %22, %23, %cst_26 {dimension_numbers = #tpu.dot_dimension_numbers<[1], [0], [0], [1], [0, 0, 1, 1], [], []>} : vector<8x64xbf16>, vector<64x32xbf16>, vector<8x32xf32> -> vector<8x32xf32>
    %c0_27 = arith.constant 0 : index
    %c0_28 = arith.constant 0 : index
    %25 = vector.load %arg6[%c0_27, %c0_28] : memref<1x32xf32, #tpu.memory_space<vmem>>, vector<1x32xf32>
    %26 = vector.broadcast %25 : vector<1x32xf32> to vector<8x32xf32>
    %27 = arith.addf %24, %26 : vector<8x32xf32>
    %cst_29 = arith.constant 0.000000e+00 : f32
    %28 = vector.broadcast %cst_29 : f32 to vector<8x32xf32>
    %29 = arith.maximumf %27, %28 : vector<8x32xf32>
    %30 = arith.truncf %7 : vector<8x16xf32> to vector<8x16xbf16>
    %c0_30 = arith.constant 0 : index
    %c0_31 = arith.constant 0 : index
    %31 = vector.load %arg7[%c0_30, %c0_31] : memref<16x32xbf16, #tpu.memory_space<vmem>>, vector<16x32xbf16>
    %cst_32 = arith.constant dense<0.000000e+00> : vector<8x32xf32>
    %32 = tpu.matmul %30, %31, %cst_32 {dimension_numbers = #tpu.dot_dimension_numbers<[1], [0], [0], [1], [0, 0, 1, 1], [], []>} : vector<8x16xbf16>, vector<16x32xbf16>, vector<8x32xf32> -> vector<8x32xf32>
    %c0_33 = arith.constant 0 : index
    %c0_34 = arith.constant 0 : index
    %33 = vector.load %arg8[%c0_33, %c0_34] : memref<1x32xf32, #tpu.memory_space<vmem>>, vector<1x32xf32>
    %34 = vector.broadcast %33 : vector<1x32xf32> to vector<8x32xf32>
    %35 = arith.addf %32, %34 : vector<8x32xf32>
    %36 = arith.addf %29, %35 : vector<8x32xf32>
    %cst_35 = arith.constant 0.000000e+00 : f32
    %37 = vector.broadcast %cst_35 : f32 to vector<8x32xf32>
    %38 = arith.maximumf %36, %37 : vector<8x32xf32>
    %39 = vector.shape_cast %38 : vector<8x32xf32> to vector<1x8x32xf32>
    %c0_36 = arith.constant 0 : index
    %c8_37 = arith.constant 8 : index
    %c0_38 = arith.constant 0 : index
    %40 = vector.load %arg31[%c0_36, %c8_37, %c0_38] : memref<1x16x32xf32, #tpu.memory_space<vmem>>, vector<1x8x32xf32>
    tpu.vector_store %arg31[%c0_36, %c8_37, %c0_38], %39 {strides = array<i32>} : memref<1x16x32xf32, #tpu.memory_space<vmem>>, vector<1x8x32xf32>,
    %c0_39 = arith.constant 0 : index
    %c6 = arith.constant 6 : index
    %c0_40 = arith.constant 0 : index
    %41 = vector.load %arg31[%c0_39, %c6, %c0_40] : memref<1x16x32xf32, #tpu.memory_space<vmem>>, vector<1x8x32xf32>
    %42 = vector.shape_cast %41 : vector<1x8x32xf32> to vector<8x32xf32>
    %c0_41 = arith.constant 0 : index
    %c8_42 = arith.constant 8 : index
    %c0_43 = arith.constant 0 : index
    %43 = vector.load %arg31[%c0_41, %c8_42, %c0_43] : memref<1x16x32xf32, #tpu.memory_space<vmem>>, vector<1x8x32xf32>
    %44 = vector.shape_cast %43 : vector<1x8x32xf32> to vector<8x32xf32>
    %45 = tpu.concatenate %42, %44 in 1 : vector<8x32xf32>, vector<8x32xf32> -> vector<8x64xf32>
    %46 = arith.truncf %45 : vector<8x64xf32> to vector<8x64xbf16>
    %c0_44 = arith.constant 0 : index
    %c0_45 = arith.constant 0 : index
    %47 = vector.load %arg9[%c0_44, %c0_45] : memref<64x16xbf16, #tpu.memory_space<vmem>>, vector<64x16xbf16>
    %cst_46 = arith.constant dense<0.000000e+00> : vector<8x16xf32>
    %48 = tpu.matmul %46, %47, %cst_46 {dimension_numbers = #tpu.dot_dimension_numbers<[1], [0], [0], [1], [0, 0, 1, 1], [], []>} : vector<8x64xbf16>, vector<64x16xbf16>, vector<8x16xf32> -> vector<8x16xf32>
    %c0_47 = arith.constant 0 : index
    %c0_48 = arith.constant 0 : index
    %49 = vector.load %arg10[%c0_47, %c0_48] : memref<1x16xf32, #tpu.memory_space<vmem>>, vector<1x16xf32>
    %50 = vector.broadcast %49 : vector<1x16xf32> to vector<8x16xf32>
    %51 = arith.addf %48, %50 : vector<8x16xf32>
    %cst_49 = arith.constant 0.000000e+00 : f32
    %52 = vector.broadcast %cst_49 : f32 to vector<8x16xf32>
    %53 = arith.maximumf %51, %52 : vector<8x16xf32>
    %54 = vector.shape_cast %53 : vector<8x16xf32> to vector<1x8x16xf32>
    %c0_50 = arith.constant 0 : index
    %c8_51 = arith.constant 8 : index
    %c0_52 = arith.constant 0 : index
    %55 = vector.load %arg31[%c0_50, %c8_51, %c0_52] : memref<1x16x32xf32, #tpu.memory_space<vmem>>, vector<1x8x16xf32>
    tpu.vector_store %arg31[%c0_50, %c8_51, %c0_52], %54 {strides = array<i32>} : memref<1x16x32xf32, #tpu.memory_space<vmem>>, vector<1x8x16xf32>,
    %c0_53 = arith.constant 0 : index
    %c6_54 = arith.constant 6 : index
    %c0_55 = arith.constant 0 : index
    %56 = vector.load %arg31[%c0_53, %c6_54, %c0_55] : memref<1x16x32xf32, #tpu.memory_space<vmem>>, vector<1x8x16xf32>
    %57 = vector.shape_cast %56 : vector<1x8x16xf32> to vector<8x16xf32>
    %58 = tpu.concatenate %57, %53 in 1 : vector<8x16xf32>, vector<8x16xf32> -> vector<8x32xf32>
    %59 = arith.truncf %58 : vector<8x32xf32> to vector<8x32xbf16>
    %c0_56 = arith.constant 0 : index
    %c0_57 = arith.constant 0 : index
    %60 = vector.load %arg11[%c0_56, %c0_57] : memref<32x16xbf16, #tpu.memory_space<vmem>>, vector<32x16xbf16>
    %cst_58 = arith.constant dense<0.000000e+00> : vector<8x16xf32>
    %61 = tpu.matmul %59, %60, %cst_58 {dimension_numbers = #tpu.dot_dimension_numbers<[1], [0], [0], [1], [0, 0, 1, 1], [], []>} : vector<8x32xbf16>, vector<32x16xbf16>, vector<8x16xf32> -> vector<8x16xf32>
    %c0_59 = arith.constant 0 : index
    %c0_60 = arith.constant 0 : index
    %62 = vector.load %arg12[%c0_59, %c0_60] : memref<1x16xf32, #tpu.memory_space<vmem>>, vector<1x16xf32>
    %63 = vector.broadcast %62 : vector<1x16xf32> to vector<8x16xf32>
    %64 = arith.addf %61, %63 : vector<8x16xf32>
    %cst_61 = arith.constant 0.000000e+00 : f32
    %65 = vector.broadcast %cst_61 : f32 to vector<8x16xf32>
    %66 = arith.maximumf %64, %65 : vector<8x16xf32>
    %67 = arith.truncf %44 : vector<8x32xf32> to vector<8x32xbf16>
    %c0_62 = arith.constant 0 : index
    %c0_63 = arith.constant 0 : index
    %68 = vector.load %arg13[%c0_62, %c0_63] : memref<32x16xbf16, #tpu.memory_space<vmem>>, vector<32x16xbf16>
    %cst_64 = arith.constant dense<0.000000e+00> : vector<8x16xf32>
    %69 = tpu.matmul %67, %68, %cst_64 {dimension_numbers = #tpu.dot_dimension_numbers<[1], [0], [0], [1], [0, 0, 1, 1], [], []>} : vector<8x32xbf16>, vector<32x16xbf16>, vector<8x16xf32> -> vector<8x16xf32>
    %c0_65 = arith.constant 0 : index
    %c0_66 = arith.constant 0 : index
    %70 = vector.load %arg14[%c0_65, %c0_66] : memref<1x16xf32, #tpu.memory_space<vmem>>, vector<1x16xf32>
    %71 = vector.broadcast %70 : vector<1x16xf32> to vector<8x16xf32>
    %72 = arith.addf %69, %71 : vector<8x16xf32>
    %73 = arith.addf %66, %72 : vector<8x16xf32>
    %cst_67 = arith.constant 0.000000e+00 : f32
    %74 = vector.broadcast %cst_67 : f32 to vector<8x16xf32>
    %75 = arith.maximumf %73, %74 : vector<8x16xf32>
    %76 = vector.shape_cast %75 : vector<8x16xf32> to vector<1x8x16xf32>
    %cst_68 = arith.constant dense<0xFF800000> : vector<1x16xf32>
    %77 = vector.multi_reduction <maximumf>, %76, %cst_68 [1] : vector<1x8x16xf32> to vector<1x16xf32>
    %c0_69 = arith.constant 0 : index
    %c0_70 = arith.constant 0 : index
    %c0_71 = arith.constant 0 : index
    %78 = vector.load %arg2[%c0_69, %c0_70, %c0_71] : memref<1x1x16xf32, #tpu.memory_space<vmem>>, vector<1x1x16xf32>
    %79 = vector.shape_cast %78 : vector<1x1x16xf32> to vector<1x16xf32>
    %80 = arith.truncf %79 : vector<1x16xf32> to vector<1x16xbf16>
    %c0_72 = arith.constant 0 : index
    %c0_73 = arith.constant 0 : index
    %81 = vector.load %arg15[%c0_72, %c0_73] : memref<16x16xbf16, #tpu.memory_space<vmem>>, vector<16x16xbf16>
    %cst_74 = arith.constant dense<0.000000e+00> : vector<1x16xf32>
    %82 = tpu.matmul %80, %81, %cst_74 {dimension_numbers = #tpu.dot_dimension_numbers<[1], [0], [0], [1], [0, 0, 1, 1], [], []>} : vector<1x16xbf16>, vector<16x16xbf16>, vector<1x16xf32> -> vector<1x16xf32>
    %c0_75 = arith.constant 0 : index
    %c0_76 = arith.constant 0 : index
    %83 = vector.load %arg16[%c0_75, %c0_76] : memref<1x16xf32, #tpu.memory_space<vmem>>, vector<1x16xf32>
    %84 = arith.addf %82, %83 : vector<1x16xf32>
    %c0_77 = arith.constant 0 : index
    %c0_78 = arith.constant 0 : index
    %85 = vector.load %arg17[%c0_77, %c0_78] : memref<1x16xf32, #tpu.memory_space<vmem>>, vector<1x16xf32>
    %c0_79 = arith.constant 0 : index
    %c0_80 = arith.constant 0 : index
    %86 = vector.load %arg18[%c0_79, %c0_80] : memref<1x16xf32, #tpu.memory_space<vmem>>, vector<1x16xf32>
    %cst_81 = arith.constant dense<0.000000e+00> : vector<1xf32>
    %87 = vector.multi_reduction <add>, %84, %cst_81 [1] : vector<1x16xf32> to vector<1xf32>
    %88 = vector.shape_cast %87 : vector<1xf32> to vector<1x1xf32>
    %cst_82 = arith.constant 1.600000e+01 : f32
    %89 = vector.broadcast %cst_82 : f32 to vector<1x1xf32>
    %90 = arith.divf %88, %89 : vector<1x1xf32>
    %91 = vector.broadcast %90 : vector<1x1xf32> to vector<1x16xf32>
    %92 = arith.subf %84, %91 : vector<1x16xf32>
    %93 = arith.mulf %92, %92 : vector<1x16xf32>
    %cst_83 = arith.constant dense<0.000000e+00> : vector<1xf32>
    %94 = vector.multi_reduction <add>, %93, %cst_83 [1] : vector<1x16xf32> to vector<1xf32>
    %95 = vector.shape_cast %94 : vector<1xf32> to vector<1x1xf32>
    %cst_84 = arith.constant 1.600000e+01 : f32
    %96 = vector.broadcast %cst_84 : f32 to vector<1x1xf32>
    %97 = arith.divf %95, %96 : vector<1x1xf32>
    %98 = vector.broadcast %90 : vector<1x1xf32> to vector<1x16xf32>
    %99 = arith.subf %84, %98 : vector<1x16xf32>
    %cst_85 = arith.constant 9.99999974E-6 : f32
    %100 = vector.broadcast %cst_85 : f32 to vector<1x1xf32>
    %101 = arith.addf %97, %100 : vector<1x1xf32>
    %102 = math.rsqrt %101 : vector<1x1xf32>
    %103 = vector.broadcast %102 : vector<1x1xf32> to vector<1x16xf32>
    %104 = arith.mulf %99, %103 : vector<1x16xf32>
    %105 = arith.mulf %104, %85 : vector<1x16xf32>
    %106 = arith.addf %105, %86 : vector<1x16xf32>
    %107 = arith.negf %106 : vector<1x16xf32>
    %108 = math.exp %107 : vector<1x16xf32>
    %cst_86 = arith.constant 1.000000e+00 : f32
    %109 = vector.broadcast %cst_86 : f32 to vector<1x16xf32>
    %110 = arith.addf %109, %108 : vector<1x16xf32>
    %111 = arith.divf %109, %110 : vector<1x16xf32>
    %112 = arith.mulf %106, %111 : vector<1x16xf32>
    %113 = tpu.concatenate %77, %112 in 1 : vector<1x16xf32>, vector<1x16xf32> -> vector<1x32xf32>
    %114 = arith.truncf %113 : vector<1x32xf32> to vector<1x32xbf16>
    %c0_87 = arith.constant 0 : index
    %c0_88 = arith.constant 0 : index
    %115 = vector.load %arg19[%c0_87, %c0_88] : memref<32x32xbf16, #tpu.memory_space<vmem>>, vector<32x32xbf16>
    %cst_89 = arith.constant dense<0.000000e+00> : vector<1x32xf32>
    %116 = tpu.matmul %114, %115, %cst_89 {dimension_numbers = #tpu.dot_dimension_numbers<[1], [0], [0], [1], [0, 0, 1, 1], [], []>} : vector<1x32xbf16>, vector<32x32xbf16>, vector<1x32xf32> -> vector<1x32xf32>
    %c0_90 = arith.constant 0 : index
    %c0_91 = arith.constant 0 : index
    %117 = vector.load %arg20[%c0_90, %c0_91] : memref<1x32xf32, #tpu.memory_space<vmem>>, vector<1x32xf32>
    %118 = arith.addf %116, %117 : vector<1x32xf32>
    %119 = vector.extract_strided_slice %118 {offsets = [0, 0], sizes = [1, 16], strides = [1, 1]} : vector<1x32xf32> to vector<1x16xf32>
    %c0_92 = arith.constant 0 : index
    %c0_93 = arith.constant 0 : index
    %120 = vector.load %arg21[%c0_92, %c0_93] : memref<1x16xf32, #tpu.memory_space<vmem>>, vector<1x16xf32>
    %c0_94 = arith.constant 0 : index
    %c0_95 = arith.constant 0 : index
    %121 = vector.load %arg22[%c0_94, %c0_95] : memref<1x16xf32, #tpu.memory_space<vmem>>, vector<1x16xf32>
    %cst_96 = arith.constant dense<0.000000e+00> : vector<1xf32>
    %122 = vector.multi_reduction <add>, %119, %cst_96 [1] : vector<1x16xf32> to vector<1xf32>
    %123 = vector.shape_cast %122 : vector<1xf32> to vector<1x1xf32>
    %cst_97 = arith.constant 1.600000e+01 : f32
    %124 = vector.broadcast %cst_97 : f32 to vector<1x1xf32>
    %125 = arith.divf %123, %124 : vector<1x1xf32>
    %126 = vector.broadcast %125 : vector<1x1xf32> to vector<1x16xf32>
    %127 = arith.subf %119, %126 : vector<1x16xf32>
    %128 = arith.mulf %127, %127 : vector<1x16xf32>
    %cst_98 = arith.constant dense<0.000000e+00> : vector<1xf32>
    %129 = vector.multi_reduction <add>, %128, %cst_98 [1] : vector<1x16xf32> to vector<1xf32>
    %130 = vector.shape_cast %129 : vector<1xf32> to vector<1x1xf32>
    %cst_99 = arith.constant 1.600000e+01 : f32
    %131 = vector.broadcast %cst_99 : f32 to vector<1x1xf32>
    %132 = arith.divf %130, %131 : vector<1x1xf32>
    %133 = vector.broadcast %125 : vector<1x1xf32> to vector<1x16xf32>
    %134 = arith.subf %119, %133 : vector<1x16xf32>
    %cst_100 = arith.constant 9.99999974E-6 : f32
    %135 = vector.broadcast %cst_100 : f32 to vector<1x1xf32>
    %136 = arith.addf %132, %135 : vector<1x1xf32>
    %137 = math.rsqrt %136 : vector<1x1xf32>
    %138 = vector.broadcast %137 : vector<1x1xf32> to vector<1x16xf32>
    %139 = arith.mulf %134, %138 : vector<1x16xf32>
    %140 = arith.mulf %139, %120 : vector<1x16xf32>
    %141 = arith.addf %140, %121 : vector<1x16xf32>
    %142 = arith.negf %141 : vector<1x16xf32>
    %143 = math.exp %142 : vector<1x16xf32>
    %cst_101 = arith.constant 1.000000e+00 : f32
    %144 = vector.broadcast %cst_101 : f32 to vector<1x16xf32>
    %145 = arith.addf %144, %143 : vector<1x16xf32>
    %146 = arith.divf %144, %145 : vector<1x16xf32>
    %147 = arith.mulf %141, %146 : vector<1x16xf32>
    %148 = vector.extract_strided_slice %118 {offsets = [0, 16], sizes = [1, 16], strides = [1, 1]} : vector<1x32xf32> to vector<1x16xf32>
    %c0_102 = arith.constant 0 : index
    %c0_103 = arith.constant 0 : index
    %149 = vector.load %arg23[%c0_102, %c0_103] : memref<1x16xf32, #tpu.memory_space<vmem>>, vector<1x16xf32>
    %c0_104 = arith.constant 0 : index
    %c0_105 = arith.constant 0 : index
    %150 = vector.load %arg24[%c0_104, %c0_105] : memref<1x16xf32, #tpu.memory_space<vmem>>, vector<1x16xf32>
    %cst_106 = arith.constant dense<0.000000e+00> : vector<1xf32>
    %151 = vector.multi_reduction <add>, %148, %cst_106 [1] : vector<1x16xf32> to vector<1xf32>
    %152 = vector.shape_cast %151 : vector<1xf32> to vector<1x1xf32>
    %cst_107 = arith.constant 1.600000e+01 : f32
    %153 = vector.broadcast %cst_107 : f32 to vector<1x1xf32>
    %154 = arith.divf %152, %153 : vector<1x1xf32>
    %155 = vector.broadcast %154 : vector<1x1xf32> to vector<1x16xf32>
    %156 = arith.subf %148, %155 : vector<1x16xf32>
    %157 = arith.mulf %156, %156 : vector<1x16xf32>
    %cst_108 = arith.constant dense<0.000000e+00> : vector<1xf32>
    %158 = vector.multi_reduction <add>, %157, %cst_108 [1] : vector<1x16xf32> to vector<1xf32>
    %159 = vector.shape_cast %158 : vector<1xf32> to vector<1x1xf32>
    %cst_109 = arith.constant 1.600000e+01 : f32
    %160 = vector.broadcast %cst_109 : f32 to vector<1x1xf32>
    %161 = arith.divf %159, %160 : vector<1x1xf32>
    %162 = vector.broadcast %154 : vector<1x1xf32> to vector<1x16xf32>
    %163 = arith.subf %148, %162 : vector<1x16xf32>
    %cst_110 = arith.constant 9.99999974E-6 : f32
    %164 = vector.broadcast %cst_110 : f32 to vector<1x1xf32>
    %165 = arith.addf %161, %164 : vector<1x1xf32>
    %166 = math.rsqrt %165 : vector<1x1xf32>
    %167 = vector.broadcast %166 : vector<1x1xf32> to vector<1x16xf32>
    %168 = arith.mulf %163, %167 : vector<1x16xf32>
    %169 = arith.mulf %168, %149 : vector<1x16xf32>
    %170 = arith.addf %169, %150 : vector<1x16xf32>
    %171 = arith.negf %170 : vector<1x16xf32>
    %172 = math.exp %171 : vector<1x16xf32>
    %cst_111 = arith.constant 1.000000e+00 : f32
    %173 = vector.broadcast %cst_111 : f32 to vector<1x16xf32>
    %174 = arith.addf %173, %172 : vector<1x16xf32>
    %175 = arith.divf %173, %174 : vector<1x16xf32>
    %176 = arith.mulf %170, %175 : vector<1x16xf32>
    %177 = arith.truncf %147 : vector<1x16xf32> to vector<1x16xbf16>
    %c0_112 = arith.constant 0 : index
    %c0_113 = arith.constant 0 : index
    %178 = vector.load %arg25[%c0_112, %c0_113] : memref<16x16xbf16, #tpu.memory_space<vmem>>, vector<16x16xbf16>
    %cst_114 = arith.constant dense<0.000000e+00> : vector<1x16xf32>
    %179 = tpu.matmul %177, %178, %cst_114 {dimension_numbers = #tpu.dot_dimension_numbers<[1], [0], [0], [1], [0, 0, 1, 1], [], []>} : vector<1x16xbf16>, vector<16x16xbf16>, vector<1x16xf32> -> vector<1x16xf32>
    %c0_115 = arith.constant 0 : index
    %c0_116 = arith.constant 0 : index
    %180 = vector.load %arg26[%c0_115, %c0_116] : memref<1x16xf32, #tpu.memory_space<vmem>>, vector<1x16xf32>
    %181 = arith.addf %179, %180 : vector<1x16xf32>
    %182 = arith.negf %181 : vector<1x16xf32>
    %183 = math.exp %182 : vector<1x16xf32>
    %cst_117 = arith.constant 1.000000e+00 : f32
    %184 = vector.broadcast %cst_117 : f32 to vector<1x16xf32>
    %185 = arith.addf %184, %183 : vector<1x16xf32>
    %186 = arith.divf %184, %185 : vector<1x16xf32>
    %187 = vector.shape_cast %186 : vector<1x16xf32> to vector<1x1x16xf32>
    %c0_118 = arith.constant 0 : index
    %c0_119 = arith.constant 0 : index
    %c0_120 = arith.constant 0 : index
    %188 = vector.load %arg29[%c0_118, %c0_119, %c0_120] : memref<1x1x16xf32, #tpu.memory_space<vmem>>, vector<1x1x16xf32>
    tpu.vector_store %arg29[%c0_118, %c0_119, %c0_120], %187 {strides = array<i32>} : memref<1x1x16xf32, #tpu.memory_space<vmem>>, vector<1x1x16xf32>,
    %189 = arith.truncf %176 : vector<1x16xf32> to vector<1x16xbf16>
    %c0_121 = arith.constant 0 : index
    %c0_122 = arith.constant 0 : index
    %190 = vector.load %arg27[%c0_121, %c0_122] : memref<16x16xbf16, #tpu.memory_space<vmem>>, vector<16x16xbf16>
    %cst_123 = arith.constant dense<0.000000e+00> : vector<1x16xf32>
    %191 = tpu.matmul %189, %190, %cst_123 {dimension_numbers = #tpu.dot_dimension_numbers<[1], [0], [0], [1], [0, 0, 1, 1], [], []>} : vector<1x16xbf16>, vector<16x16xbf16>, vector<1x16xf32> -> vector<1x16xf32>
    %c0_124 = arith.constant 0 : index
    %c0_125 = arith.constant 0 : index
    %192 = vector.load %arg28[%c0_124, %c0_125] : memref<1x16xf32, #tpu.memory_space<vmem>>, vector<1x16xf32>
    %193 = arith.addf %191, %192 : vector<1x16xf32>
    %cst_126 = arith.constant dense<0xFF800000> : vector<1xf32>
    %194 = vector.multi_reduction <maximumf>, %193, %cst_126 [1] : vector<1x16xf32> to vector<1xf32>
    %195 = vector.shape_cast %194 : vector<1xf32> to vector<1x1xf32>
    %196 = vector.broadcast %195 : vector<1x1xf32> to vector<1x16xf32>
    %197 = arith.subf %193, %196 : vector<1x16xf32>
    %198 = math.exp %197 : vector<1x16xf32>
    %cst_127 = arith.constant dense<0.000000e+00> : vector<1xf32>
    %199 = vector.multi_reduction <add>, %198, %cst_127 [1] : vector<1x16xf32> to vector<1xf32>
    %200 = vector.shape_cast %199 : vector<1xf32> to vector<1x1xf32>
    %201 = tpu.reciprocal %200 {approx = true} : vector<1x1xf32> -> vector<1x1xf32>
    %202 = vector.broadcast %201 : vector<1x1xf32> to vector<1x16xf32>
    %203 = arith.mulf %198, %202 : vector<1x16xf32>
    %204 = vector.shape_cast %203 : vector<1x16xf32> to vector<1x1x16xf32>
    %c0_128 = arith.constant 0 : index
    %c0_129 = arith.constant 0 : index
    %c0_130 = arith.constant 0 : index
    %205 = vector.load %arg30[%c0_128, %c0_129, %c0_130] : memref<1x1x16xf32, #tpu.memory_space<vmem>>, vector<1x1x16xf32>
    tpu.vector_store %arg30[%c0_128, %c0_129, %c0_130], %204 {strides = array<i32>} : memref<1x1x16xf32, #tpu.memory_space<vmem>>, vector<1x1x16xf32>,
    return
  }
  func.func @transform_0(%arg0: i32) -> (i32, i32, i32) {
    %c0_i32 = arith.constant 0 : i32
    %c0_i32_0 = arith.constant 0 : i32
    %c0_i32_1 = arith.constant 0 : i32
    return %arg0, %c0_i32, %c0_i32_0 : i32, i32, i32
  }
  func.func @transform_1(%arg0: i32) -> (i32, i32, i32) {
    %c0_i32 = arith.constant 0 : i32
    %c0_i32_0 = arith.constant 0 : i32
    %c0_i32_1 = arith.constant 0 : i32
    return %arg0, %c0_i32, %c0_i32_0 : i32, i32, i32
  }
  func.func @transform_2(%arg0: i32) -> (i32, i32) {
    %c0_i32 = arith.constant 0 : i32
    %c0_i32_0 = arith.constant 0 : i32
    %c0_i32_1 = arith.constant 0 : i32
    return %c0_i32, %c0_i32_0 : i32, i32
  }
  func.func @transform_3(%arg0: i32) -> (i32, i32) {
    %c0_i32 = arith.constant 0 : i32
    %c0_i32_0 = arith.constant 0 : i32
    %c0_i32_1 = arith.constant 0 : i32
    return %c0_i32, %c0_i32_0 : i32, i32
  }
  func.func @transform_4(%arg0: i32) -> (i32, i32) {
    %c0_i32 = arith.constant 0 : i32
    %c0_i32_0 = arith.constant 0 : i32
    %c0_i32_1 = arith.constant 0 : i32
    return %c0_i32, %c0_i32_0 : i32, i32
  }
  func.func @transform_5(%arg0: i32) -> (i32, i32) {
    %c0_i32 = arith.constant 0 : i32
    %c0_i32_0 = arith.constant 0 : i32
    %c0_i32_1 = arith.constant 0 : i32
    return %c0_i32, %c0_i32_0 : i32, i32
  }
  func.func @transform_6(%arg0: i32) -> (i32, i32) {
    %c0_i32 = arith.constant 0 : i32
    %c0_i32_0 = arith.constant 0 : i32
    %c0_i32_1 = arith.constant 0 : i32
    return %c0_i32, %c0_i32_0 : i32, i32
  }
  func.func @transform_7(%arg0: i32) -> (i32, i32) {
    %c0_i32 = arith.constant 0 : i32
    %c0_i32_0 = arith.constant 0 : i32
    %c0_i32_1 = arith.constant 0 : i32
    return %c0_i32, %c0_i32_0 : i32, i32
  }
  func.func @transform_8(%arg0: i32) -> (i32, i32) {
    %c0_i32 = arith.constant 0 : i32
    %c0_i32_0 = arith.constant 0 : i32
    %c0_i32_1 = arith.constant 0 : i32
    return %c0_i32, %c0_i32_0 : i32, i32
  }
  func.func @transform_9(%arg0: i32) -> (i32, i32) {
    %c0_i32 = arith.constant 0 : i32
    %c0_i32_0 = arith.constant 0 : i32
    %c0_i32_1 = arith.constant 0 : i32
    return %c0_i32, %c0_i32_0 : i32, i32
  }
  func.func @transform_10(%arg0: i32) -> (i32, i32) {
    %c0_i32 = arith.constant 0 : i32
    %c0_i32_0 = arith.constant 0 : i32
    %c0_i32_1 = arith.constant 0 : i32
    return %c0_i32, %c0_i32_0 : i32, i32
  }
  func.func @transform_11(%arg0: i32) -> (i32, i32) {
    %c0_i32 = arith.constant 0 : i32
    %c0_i32_0 = arith.constant 0 : i32
    %c0_i32_1 = arith.constant 0 : i32
    return %c0_i32, %c0_i32_0 : i32, i32
  }
  func.func @transform_12(%arg0: i32) -> (i32, i32) {
    %c0_i32 = arith.constant 0 : i32
    %c0_i32_0 = arith.constant 0 : i32
    %c0_i32_1 = arith.constant 0 : i32
    return %c0_i32, %c0_i32_0 : i32, i32
  }
  func.func @transform_13(%arg0: i32) -> (i32, i32) {
    %c0_i32 = arith.constant 0 : i32
    %c0_i32_0 = arith.constant 0 : i32
    %c0_i32_1 = arith.constant 0 : i32
    return %c0_i32, %c0_i32_0 : i32, i32
  }
  func.func @transform_14(%arg0: i32) -> (i32, i32) {
    %c0_i32 = arith.constant 0 : i32
    %c0_i32_0 = arith.constant 0 : i32
    %c0_i32_1 = arith.constant 0 : i32
    return %c0_i32, %c0_i32_0 : i32, i32
  }
  func.func @transform_15(%arg0: i32) -> (i32, i32) {
    %c0_i32 = arith.constant 0 : i32
    %c0_i32_0 = arith.constant 0 : i32
    %c0_i32_1 = arith.constant 0 : i32
    return %c0_i32, %c0_i32_0 : i32, i32
  }
  func.func @transform_16(%arg0: i32) -> (i32, i32) {
    %c0_i32 = arith.constant 0 : i32
    %c0_i32_0 = arith.constant 0 : i32
    %c0_i32_1 = arith.constant 0 : i32
    return %c0_i32, %c0_i32_0 : i32, i32
  }
  func.func @transform_17(%arg0: i32) -> (i32, i32) {
    %c0_i32 = arith.constant 0 : i32
    %c0_i32_0 = arith.constant 0 : i32
    %c0_i32_1 = arith.constant 0 : i32
    return %c0_i32, %c0_i32_0 : i32, i32
  }
  func.func @transform_18(%arg0: i32) -> (i32, i32) {
    %c0_i32 = arith.constant 0 : i32
    %c0_i32_0 = arith.constant 0 : i32
    %c0_i32_1 = arith.constant 0 : i32
    return %c0_i32, %c0_i32_0 : i32, i32
  }
  func.func @transform_19(%arg0: i32) -> (i32, i32) {
    %c0_i32 = arith.constant 0 : i32
    %c0_i32_0 = arith.constant 0 : i32
    %c0_i32_1 = arith.constant 0 : i32
    return %c0_i32, %c0_i32_0 : i32, i32
  }
  func.func @transform_20(%arg0: i32) -> (i32, i32) {
    %c0_i32 = arith.constant 0 : i32
    %c0_i32_0 = arith.constant 0 : i32
    %c0_i32_1 = arith.constant 0 : i32
    return %c0_i32, %c0_i32_0 : i32, i32
  }
  func.func @transform_21(%arg0: i32) -> (i32, i32) {
    %c0_i32 = arith.constant 0 : i32
    %c0_i32_0 = arith.constant 0 : i32
    %c0_i32_1 = arith.constant 0 : i32
    return %c0_i32, %c0_i32_0 : i32, i32
  }
  func.func @transform_22(%arg0: i32) -> (i32, i32) {
    %c0_i32 = arith.constant 0 : i32
    %c0_i32_0 = arith.constant 0 : i32
    %c0_i32_1 = arith.constant 0 : i32
    return %c0_i32, %c0_i32_0 : i32, i32
  }
  func.func @transform_23(%arg0: i32) -> (i32, i32) {
    %c0_i32 = arith.constant 0 : i32
    %c0_i32_0 = arith.constant 0 : i32
    %c0_i32_1 = arith.constant 0 : i32
    return %c0_i32, %c0_i32_0 : i32, i32
  }
  func.func @transform_24(%arg0: i32) -> (i32, i32) {
    %c0_i32 = arith.constant 0 : i32
    %c0_i32_0 = arith.constant 0 : i32
    %c0_i32_1 = arith.constant 0 : i32
    return %c0_i32, %c0_i32_0 : i32, i32
  }
  func.func @transform_25(%arg0: i32) -> (i32, i32) {
    %c0_i32 = arith.constant 0 : i32
    %c0_i32_0 = arith.constant 0 : i32
    %c0_i32_1 = arith.constant 0 : i32
    return %c0_i32, %c0_i32_0 : i32, i32
  }
  func.func @transform_26(%arg0: i32) -> (i32, i32) {
    %c0_i32 = arith.constant 0 : i32
    %c0_i32_0 = arith.constant 0 : i32
    %c0_i32_1 = arith.constant 0 : i32
    return %c0_i32, %c0_i32_0 : i32, i32
  }
  func.func @transform_27(%arg0: i32) -> (i32, i32) {
    %c0_i32 = arith.constant 0 : i32
    %c0_i32_0 = arith.constant 0 : i32
    %c0_i32_1 = arith.constant 0 : i32
    return %c0_i32, %c0_i32_0 : i32, i32
  }
  func.func @transform_28(%arg0: i32) -> (i32, i32, i32) {
    %c0_i32 = arith.constant 0 : i32
    %c0_i32_0 = arith.constant 0 : i32
    %c0_i32_1 = arith.constant 0 : i32
    return %arg0, %c0_i32, %c0_i32_0 : i32, i32, i32
  }
  func.func @transform_29(%arg0: i32) -> (i32, i32, i32) {
    %c0_i32 = arith.constant 0 : i32
    %c0_i32_0 = arith.constant 0 : i32
    %c0_i32_1 = arith.constant 0 : i32
    return %arg0, %c0_i32, %c0_i32_0 : i32, i32, i32
  }
}

</mosaic_0001>

<llo_original>
// kernel: tpu_custom_call.1
$region0: #{tpu_custom_call.1}
  #allocation0 [shape = 'u32[]', space=smem, size = 0x4, offset = 0x4, fixed_abs, tag = 'smem constant byte address 0x4 - core index']
  #allocation1 [shape = 'u32[72,128]{1,0:T(1,128)}', space=vmem, size = 0x9000, scoped, tag = 'internal scratch']
  #allocation2 [shape = 'f32[1,16,32]{2,1,0:T(8,128)}', space=vmem, size = 0x2000, scoped, tag = 'scratch operand']
  %s0 = inlined_call_operand.smem [shape: u32[30], index: -1, kind: input, shape index: {}]
  %s1 = sld [smem:[%s0]]
  %s2 = scalar_lea.smem %s0, 1
  %s3 = sld [smem:[%s2]]
  %s4 = scalar_lea.smem %s0, 2
  %s5 = sld [smem:[%s4]]
  %s6 = scalar_lea.smem %s0, 3
  %s7 = sld [smem:[%s6]]
  %s8 = scalar_lea.smem %s0, 4
  %s9 = sld [smem:[%s8]]
  %s10 = scalar_lea.smem %s0, 5
  %s11 = sld [smem:[%s10]]
  %s12 = scalar_lea.smem %s0, 6
  %s13 = sld [smem:[%s12]]
  %s14 = scalar_lea.smem %s0, 7
  %s15 = sld [smem:[%s14]]
  %s16 = scalar_lea.smem %s0, 8
  %s17 = sld [smem:[%s16]]
  %s18 = scalar_lea.smem %s0, 9
  %s19 = sld [smem:[%s18]]
  %s20 = scalar_lea.smem %s0, 10
  %s21 = sld [smem:[%s20]]
  %s22 = scalar_lea.smem %s0, 11
  %s23 = sld [smem:[%s22]]
  %s24 = scalar_lea.smem %s0, 12
  %s25 = sld [smem:[%s24]]
  %s26 = scalar_lea.smem %s0, 13
  %s27 = sld [smem:[%s26]]
  %s28 = scalar_lea.smem %s0, 14
  %s29 = sld [smem:[%s28]]
  %s30 = scalar_lea.smem %s0, 15
  %s31 = sld [smem:[%s30]]
  %s32 = scalar_lea.smem %s0, 16
  %s33 = sld [smem:[%s32]]
  %s34 = scalar_lea.smem %s0, 17
  %s35 = sld [smem:[%s34]]
  %s36 = scalar_lea.smem %s0, 18
  %s37 = sld [smem:[%s36]]
  %s38 = scalar_lea.smem %s0, 19
  %s39 = sld [smem:[%s38]]
  %s40 = scalar_lea.smem %s0, 20
  %s41 = sld [smem:[%s40]]
  %s42 = scalar_lea.smem %s0, 21
  %s43 = sld [smem:[%s42]]
  %s44 = scalar_lea.smem %s0, 22
  %s45 = sld [smem:[%s44]]
  %s46 = scalar_lea.smem %s0, 23
  %s47 = sld [smem:[%s46]]
  %s48 = scalar_lea.smem %s0, 24
  %s49 = sld [smem:[%s48]]
  %s50 = scalar_lea.smem %s0, 25
  %s51 = sld [smem:[%s50]]
  %s52 = scalar_lea.smem %s0, 26
  %s53 = sld [smem:[%s52]]
  %s54 = scalar_lea.smem %s0, 27
  %s55 = sld [smem:[%s54]]
  %s56 = scalar_lea.smem %s0, 28
  %s57 = sld [smem:[%s56]]
  %s58 = scalar_lea.smem %s0, 29
  %s59 = sld [smem:[%s58]]
  %60 = xla_tuple %s57, %s59
  %s61 = sld [smem:[#allocation0]]
  $region153: #{tpu_custom_call.1} parent=0
    _
  %s63 = ssub.s32 1, %s61
  %s64 = scalar_select 0, %s63, %s61
  $region1: #{tpu_custom_call.1} parent=0
    #allocation3 [shape = 'u8[1024]{0}', space=vmem, size = 0x400, scoped, tag = 'output window, operand 0']
    #allocation4 [shape = 's32[2]{0}', space=sflag, size = 0x8, scoped, tag = 'scoped memory for tpu_custom_call.1']
    #allocation5 [shape = 'u8[1024]{0}', space=vmem, size = 0x400, scoped, tag = 'output window, operand 1']
    #allocation6 [shape = 's32[2]{0}', space=sflag, size = 0x8, scoped, tag = 'scoped memory for tpu_custom_call.1']
    %65 = vsyncpa [#allocation4], 0
    %s66 = scalar_lea.sflag [#allocation4], 1
    %67 = vsyncpa %s66, 0
    %68 = vsyncpa [#allocation6], 0
    %s69 = scalar_lea.sflag [#allocation6], 1
    %70 = vsyncpa %s69, 0
    loop: start=0, step=1, limit=4
    $region2: #{tpu_custom_call.1} parent=1 // loop_pre_header
      _
    $region3: #{tpu_custom_call.1} parent=1 // loop_header
      %s72 = sphi 0, %s76
      %p73 = scmp.ge.s32.totalorder %s72, 4
      %s82 = sphi 0, %s84
      %s85 = sphi 0, %s82
      %s86 = sphi 0, %s85
      %s102 = sphi 0, %s86
      %s108 = sphi 0, %s110
      %s111 = sphi 0, %s108
      %s112 = sphi 0, %s111
      %s128 = sphi 0, %s112
      %s132 = sphi 0, %s132
      %s134 = sphi 0, %s132
      %s135 = sphi 0, %s134
      %s149 = sphi 0, %s135
      %s153 = sphi 0, %s153
      %s155 = sphi 0, %s153
      %s156 = sphi 0, %s155
      %s170 = sphi 0, %s156
      %s174 = sphi 0, %s174
      %s176 = sphi 0, %s174
      %s177 = sphi 0, %s176
      %s191 = sphi 0, %s177
      %s195 = sphi 0, %s195
      %s197 = sphi 0, %s195
      %s198 = sphi 0, %s197
      %s212 = sphi 0, %s198
      %s216 = sphi 0, %s216
      %s218 = sphi 0, %s216
      %s219 = sphi 0, %s218
      %s233 = sphi 0, %s219
      %s237 = sphi 0, %s237
      %s239 = sphi 0, %s237
      %s240 = sphi 0, %s239
      %s254 = sphi 0, %s240
      %s258 = sphi 0, %s258
      %s260 = sphi 0, %s258
      %s261 = sphi 0, %s260
      %s275 = sphi 0, %s261
      %s279 = sphi 0, %s279
      %s281 = sphi 0, %s279
      %s282 = sphi 0, %s281
      %s296 = sphi 0, %s282
      %s300 = sphi 0, %s300
      %s302 = sphi 0, %s300
      %s303 = sphi 0, %s302
      %s317 = sphi 0, %s303
      %s321 = sphi 0, %s321
      %s323 = sphi 0, %s321
      %s324 = sphi 0, %s323
      %s338 = sphi 0, %s324
      %s342 = sphi 0, %s342
      %s344 = sphi 0, %s342
      %s345 = sphi 0, %s344
      %s359 = sphi 0, %s345
      %s363 = sphi 0, %s363
      %s365 = sphi 0, %s363
      %s366 = sphi 0, %s365
      %s380 = sphi 0, %s366
      %s384 = sphi 0, %s384
      %s386 = sphi 0, %s384
      %s387 = sphi 0, %s386
      %s401 = sphi 0, %s387
      %s405 = sphi 0, %s405
      %s407 = sphi 0, %s405
      %s408 = sphi 0, %s407
      %s422 = sphi 0, %s408
      %s426 = sphi 0, %s426
      %s428 = sphi 0, %s426
      %s429 = sphi 0, %s428
      %s443 = sphi 0, %s429
      %s447 = sphi 0, %s447
      %s449 = sphi 0, %s447
      %s450 = sphi 0, %s449
      %s464 = sphi 0, %s450
      %s468 = sphi 0, %s468
      %s470 = sphi 0, %s468
      %s471 = sphi 0, %s470
      %s485 = sphi 0, %s471
      %s489 = sphi 0, %s489
      %s491 = sphi 0, %s489
      %s492 = sphi 0, %s491
      %s506 = sphi 0, %s492
      %s510 = sphi 0, %s510
      %s512 = sphi 0, %s510
      %s513 = sphi 0, %s512
      %s527 = sphi 0, %s513
      %s531 = sphi 0, %s531
      %s533 = sphi 0, %s531
      %s534 = sphi 0, %s533
      %s548 = sphi 0, %s534
      %s552 = sphi 0, %s552
      %s554 = sphi 0, %s552
      %s555 = sphi 0, %s554
      %s569 = sphi 0, %s555
      %s573 = sphi 0, %s573
      %s575 = sphi 0, %s573
      %s576 = sphi 0, %s575
      %s590 = sphi 0, %s576
      %s594 = sphi 0, %s594
      %s596 = sphi 0, %s594
      %s597 = sphi 0, %s596
      %s611 = sphi 0, %s597
      %s615 = sphi 0, %s615
      %s617 = sphi 0, %s615
      %s618 = sphi 0, %s617
      %s632 = sphi 0, %s618
      %s636 = sphi 0, %s636
      %s638 = sphi 0, %s636
      %s639 = sphi 0, %s638
      %s653 = sphi 0, %s639
      %s657 = sphi 0, %s657
      %s659 = sphi 0, %s657
      %s660 = sphi 0, %s659
      %s674 = sphi 0, %s660
      %s680 = sphi 0, %s682
      %s683 = sphi 0, %s680
      %s684 = sphi 0, %s683
      %s700 = sphi 0, %s684
      %s706 = sphi 0, %s708
      %s709 = sphi 0, %s706
      %s710 = sphi 0, %s709
      %s726 = sphi 0, %s710
    $region4: #{tpu_custom_call.1} parent=1 // loop_header_branch
      %75 = sbr.rel (%p73) target = $region8
    $region5: #{tpu_custom_call.1} parent=1 // loop_body
      %s77 = ssub.s32 %s72, 1
      %s78 = ssub.s32 %s72, 2
      %s79 = sadd.s32 %s72, 1
      %s80 = ssub.s32 %s72, %s79
      %p81 = scmp.eq.s32.totalorder %s80, 0
      %s83 = sadd.s32 %s82, 1
      %s84 = scalar_select %p81, %s82, %s83
      %p87 = pneg %p81
      %p88 = scmp.eq.s32.totalorder %s72, 1
      %p89 = por %p87, %p88
      %p90 = scmp.ne.s32.totalorder %s82, %s85
      %p91 = scmp.eq.s32.totalorder %s72, 0
      %p92 = por %p90, %p91
      %p93 = scmp.ne.s32.totalorder %s82, %s85
      %p94 = scmp.eq.s32.totalorder %s77, 1
      %p95 = por %p93, %p94
      %p96 = scmp.ne.s32.totalorder %s85, %s86
      %p97 = scmp.eq.s32.totalorder %s77, 0
      %p98 = por %p96, %p97
      %p99 = scmp.ne.s32.totalorder %s85, %s86
      %p100 = scmp.eq.s32.totalorder %s78, 1
      %p101 = por %p99, %p100
      %p103 = scmp.ne.s32.totalorder %s86, %s102
      %p104 = scmp.eq.s32.totalorder %s78, 0
      %p105 = por %p103, %p104
      %s106 = ssub.s32 %s72, %s79
      %p107 = scmp.eq.s32.totalorder %s106, 0
      %s109 = sadd.s32 %s108, 1
      %s110 = scalar_select %p107, %s108, %s109
      %p113 = pneg %p107
      %p114 = scmp.eq.s32.totalorder %s72, 1
      %p115 = por %p113, %p114
      %p116 = scmp.ne.s32.totalorder %s108, %s111
      %p117 = scmp.eq.s32.totalorder %s72, 0
      %p118 = por %p116, %p117
      %p119 = scmp.ne.s32.totalorder %s108, %s111
      %p120 = scmp.eq.s32.totalorder %s77, 1
      %p121 = por %p119, %p120
      %p122 = scmp.ne.s32.totalorder %s111, %s112
      %p123 = scmp.eq.s32.totalorder %s77, 0
      %p124 = por %p122, %p123
      %p125 = scmp.ne.s32.totalorder %s111, %s112
      %p126 = scmp.eq.s32.totalorder %s78, 1
      %p127 = por %p125, %p126
      %p129 = scmp.ne.s32.totalorder %s112, %s128
      %p130 = scmp.eq.s32.totalorder %s78, 0
      %p131 = por %p129, %p130
      %s133 = sadd.s32 %s132, 1
      %p136 = scmp.eq.s32.totalorder %s72, 1
      %p137 = scmp.ne.s32.totalorder %s132, %s134
      %p138 = scmp.eq.s32.totalorder %s72, 0
      %p139 = por %p137, %p138
      %p140 = scmp.ne.s32.totalorder %s132, %s134
      %p141 = scmp.eq.s32.totalorder %s77, 1
      %p142 = por %p140, %p141
      %p143 = scmp.ne.s32.totalorder %s134, %s135
      %p144 = scmp.eq.s32.totalorder %s77, 0
      %p145 = por %p143, %p144
      %p146 = scmp.ne.s32.totalorder %s134, %s135
      %p147 = scmp.eq.s32.totalorder %s78, 1
      %p148 = por %p146, %p147
      %p150 = scmp.ne.s32.totalorder %s135, %s149
      %p151 = scmp.eq.s32.totalorder %s78, 0
      %p152 = por %p150, %p151
      %s154 = sadd.s32 %s153, 1
      %p157 = scmp.eq.s32.totalorder %s72, 1
      %p158 = scmp.ne.s32.totalorder %s153, %s155
      %p159 = scmp.eq.s32.totalorder %s72, 0
      %p160 = por %p158, %p159
      %p161 = scmp.ne.s32.totalorder %s153, %s155
      %p162 = scmp.eq.s32.totalorder %s77, 1
      %p163 = por %p161, %p162
      %p164 = scmp.ne.s32.totalorder %s155, %s156
      %p165 = scmp.eq.s32.totalorder %s77, 0
      %p166 = por %p164, %p165
      %p167 = scmp.ne.s32.totalorder %s155, %s156
      %p168 = scmp.eq.s32.totalorder %s78, 1
      %p169 = por %p167, %p168
      %p171 = scmp.ne.s32.totalorder %s156, %s170
      %p172 = scmp.eq.s32.totalorder %s78, 0
      %p173 = por %p171, %p172
      %s175 = sadd.s32 %s174, 1
      %p178 = scmp.eq.s32.totalorder %s72, 1
      %p179 = scmp.ne.s32.totalorder %s174, %s176
      %p180 = scmp.eq.s32.totalorder %s72, 0
      %p181 = por %p179, %p180
      %p182 = scmp.ne.s32.totalorder %s174, %s176
      %p183 = scmp.eq.s32.totalorder %s77, 1
      %p184 = por %p182, %p183
      %p185 = scmp.ne.s32.totalorder %s176, %s177
      %p186 = scmp.eq.s32.totalorder %s77, 0
      %p187 = por %p185, %p186
      %p188 = scmp.ne.s32.totalorder %s176, %s177
      %p189 = scmp.eq.s32.totalorder %s78, 1
      %p190 = por %p188, %p189
      %p192 = scmp.ne.s32.totalorder %s177, %s191
      %p193 = scmp.eq.s32.totalorder %s78, 0
      %p194 = por %p192, %p193
      %s196 = sadd.s32 %s195, 1
      %p199 = scmp.eq.s32.totalorder %s72, 1
      %p200 = scmp.ne.s32.totalorder %s195, %s197
      %p201 = scmp.eq.s32.totalorder %s72, 0
      %p202 = por %p200, %p201
      %p203 = scmp.ne.s32.totalorder %s195, %s197
      %p204 = scmp.eq.s32.totalorder %s77, 1
      %p205 = por %p203, %p204
      %p206 = scmp.ne.s32.totalorder %s197, %s198
      %p207 = scmp.eq.s32.totalorder %s77, 0
      %p208 = por %p206, %p207
      %p209 = scmp.ne.s32.totalorder %s197, %s198
      %p210 = scmp.eq.s32.totalorder %s78, 1
      %p211 = por %p209, %p210
      %p213 = scmp.ne.s32.totalorder %s198, %s212
      %p214 = scmp.eq.s32.totalorder %s78, 0
      %p215 = por %p213, %p214
      %s217 = sadd.s32 %s216, 1
      %p220 = scmp.eq.s32.totalorder %s72, 1
      %p221 = scmp.ne.s32.totalorder %s216, %s218
      %p222 = scmp.eq.s32.totalorder %s72, 0
      %p223 = por %p221, %p222
      %p224 = scmp.ne.s32.totalorder %s216, %s218
      %p225 = scmp.eq.s32.totalorder %s77, 1
      %p226 = por %p224, %p225
      %p227 = scmp.ne.s32.totalorder %s218, %s219
      %p228 = scmp.eq.s32.totalorder %s77, 0
      %p229 = por %p227, %p228
      %p230 = scmp.ne.s32.totalorder %s218, %s219
      %p231 = scmp.eq.s32.totalorder %s78, 1
      %p232 = por %p230, %p231
      %p234 = scmp.ne.s32.totalorder %s219, %s233
      %p235 = scmp.eq.s32.totalorder %s78, 0
      %p236 = por %p234, %p235
      %s238 = sadd.s32 %s237, 1
      %p241 = scmp.eq.s32.totalorder %s72, 1
      %p242 = scmp.ne.s32.totalorder %s237, %s239
      %p243 = scmp.eq.s32.totalorder %s72, 0
      %p244 = por %p242, %p243
      %p245 = scmp.ne.s32.totalorder %s237, %s239
      %p246 = scmp.eq.s32.totalorder %s77, 1
      %p247 = por %p245, %p246
      %p248 = scmp.ne.s32.totalorder %s239, %s240
      %p249 = scmp.eq.s32.totalorder %s77, 0
      %p250 = por %p248, %p249
      %p251 = scmp.ne.s32.totalorder %s239, %s240
      %p252 = scmp.eq.s32.totalorder %s78, 1
      %p253 = por %p251, %p252
      %p255 = scmp.ne.s32.totalorder %s240, %s254
      %p256 = scmp.eq.s32.totalorder %s78, 0
      %p257 = por %p255, %p256
      %s259 = sadd.s32 %s258, 1
      %p262 = scmp.eq.s32.totalorder %s72, 1
      %p263 = scmp.ne.s32.totalorder %s258, %s260
      %p264 = scmp.eq.s32.totalorder %s72, 0
      %p265 = por %p263, %p264
      %p266 = scmp.ne.s32.totalorder %s258, %s260
      %p267 = scmp.eq.s32.totalorder %s77, 1
      %p268 = por %p266, %p267
      %p269 = scmp.ne.s32.totalorder %s260, %s261
      %p270 = scmp.eq.s32.totalorder %s77, 0
      %p271 = por %p269, %p270
      %p272 = scmp.ne.s32.totalorder %s260, %s261
      %p273 = scmp.eq.s32.totalorder %s78, 1
      %p274 = por %p272, %p273
      %p276 = scmp.ne.s32.totalorder %s261, %s275
      %p277 = scmp.eq.s32.totalorder %s78, 0
      %p278 = por %p276, %p277
      %s280 = sadd.s32 %s279, 1
      %p283 = scmp.eq.s32.totalorder %s72, 1
      %p284 = scmp.ne.s32.totalorder %s279, %s281
      %p285 = scmp.eq.s32.totalorder %s72, 0
      %p286 = por %p284, %p285
      %p287 = scmp.ne.s32.totalorder %s279, %s281
      %p288 = scmp.eq.s32.totalorder %s77, 1
      %p289 = por %p287, %p288
      %p290 = scmp.ne.s32.totalorder %s281, %s282
      %p291 = scmp.eq.s32.totalorder %s77, 0
      %p292 = por %p290, %p291
      %p293 = scmp.ne.s32.totalorder %s281, %s282
      %p294 = scmp.eq.s32.totalorder %s78, 1
      %p295 = por %p293, %p294
      %p297 = scmp.ne.s32.totalorder %s282, %s296
      %p298 = scmp.eq.s32.totalorder %s78, 0
      %p299 = por %p297, %p298
      %s301 = sadd.s32 %s300, 1
      %p304 = scmp.eq.s32.totalorder %s72, 1
      %p305 = scmp.ne.s32.totalorder %s300, %s302
      %p306 = scmp.eq.s32.totalorder %s72, 0
      %p307 = por %p305, %p306
      %p308 = scmp.ne.s32.totalorder %s300, %s302
      %p309 = scmp.eq.s32.totalorder %s77, 1
      %p310 = por %p308, %p309
      %p311 = scmp.ne.s32.totalorder %s302, %s303
      %p312 = scmp.eq.s32.totalorder %s77, 0
      %p313 = por %p311, %p312
      %p314 = scmp.ne.s32.totalorder %s302, %s303
      %p315 = scmp.eq.s32.totalorder %s78, 1
      %p316 = por %p314, %p315
      %p318 = scmp.ne.s32.totalorder %s303, %s317
      %p319 = scmp.eq.s32.totalorder %s78, 0
      %p320 = por %p318, %p319
      %s322 = sadd.s32 %s321, 1
      %p325 = scmp.eq.s32.totalorder %s72, 1
      %p326 = scmp.ne.s32.totalorder %s321, %s323
      %p327 = scmp.eq.s32.totalorder %s72, 0
      %p328 = por %p326, %p327
      %p329 = scmp.ne.s32.totalorder %s321, %s323
      %p330 = scmp.eq.s32.totalorder %s77, 1
      %p331 = por %p329, %p330
      %p332 = scmp.ne.s32.totalorder %s323, %s324
      %p333 = scmp.eq.s32.totalorder %s77, 0
      %p334 = por %p332, %p333
      %p335 = scmp.ne.s32.totalorder %s323, %s324
      %p336 = scmp.eq.s32.totalorder %s78, 1
      %p337 = por %p335, %p336
      %p339 = scmp.ne.s32.totalorder %s324, %s338
      %p340 = scmp.eq.s32.totalorder %s78, 0
      %p341 = por %p339, %p340
      %s343 = sadd.s32 %s342, 1
      %p346 = scmp.eq.s32.totalorder %s72, 1
      %p347 = scmp.ne.s32.totalorder %s342, %s344
      %p348 = scmp.eq.s32.totalorder %s72, 0
      %p349 = por %p347, %p348
      %p350 = scmp.ne.s32.totalorder %s342, %s344
      %p351 = scmp.eq.s32.totalorder %s77, 1
      %p352 = por %p350, %p351
      %p353 = scmp.ne.s32.totalorder %s344, %s345
      %p354 = scmp.eq.s32.totalorder %s77, 0
      %p355 = por %p353, %p354
      %p356 = scmp.ne.s32.totalorder %s344, %s345
      %p357 = scmp.eq.s32.totalorder %s78, 1
      %p358 = por %p356, %p357
      %p360 = scmp.ne.s32.totalorder %s345, %s359
      %p361 = scmp.eq.s32.totalorder %s78, 0
      %p362 = por %p360, %p361
      %s364 = sadd.s32 %s363, 1
      %p367 = scmp.eq.s32.totalorder %s72, 1
      %p368 = scmp.ne.s32.totalorder %s363, %s365
      %p369 = scmp.eq.s32.totalorder %s72, 0
      %p370 = por %p368, %p369
      %p371 = scmp.ne.s32.totalorder %s363, %s365
      %p372 = scmp.eq.s32.totalorder %s77, 1
      %p373 = por %p371, %p372
      %p374 = scmp.ne.s32.totalorder %s365, %s366
      %p375 = scmp.eq.s32.totalorder %s77, 0
      %p376 = por %p374, %p375
      %p377 = scmp.ne.s32.totalorder %s365, %s366
      %p378 = scmp.eq.s32.totalorder %s78, 1
      %p379 = por %p377, %p378
      %p381 = scmp.ne.s32.totalorder %s366, %s380
      %p382 = scmp.eq.s32.totalorder %s78, 0
      %p383 = por %p381, %p382
      %s385 = sadd.s32 %s384, 1
      %p388 = scmp.eq.s32.totalorder %s72, 1
      %p389 = scmp.ne.s32.totalorder %s384, %s386
      %p390 = scmp.eq.s32.totalorder %s72, 0
      %p391 = por %p389, %p390
      %p392 = scmp.ne.s32.totalorder %s384, %s386
      %p393 = scmp.eq.s32.totalorder %s77, 1
      %p394 = por %p392, %p393
      %p395 = scmp.ne.s32.totalorder %s386, %s387
      %p396 = scmp.eq.s32.totalorder %s77, 0
      %p397 = por %p395, %p396
      %p398 = scmp.ne.s32.totalorder %s386, %s387
      %p399 = scmp.eq.s32.totalorder %s78, 1
      %p400 = por %p398, %p399
      %p402 = scmp.ne.s32.totalorder %s387, %s401
      %p403 = scmp.eq.s32.totalorder %s78, 0
      %p404 = por %p402, %p403
      %s406 = sadd.s32 %s405, 1
      %p409 = scmp.eq.s32.totalorder %s72, 1
      %p410 = scmp.ne.s32.totalorder %s405, %s407
      %p411 = scmp.eq.s32.totalorder %s72, 0
      %p412 = por %p410, %p411
      %p413 = scmp.ne.s32.totalorder %s405, %s407
      %p414 = scmp.eq.s32.totalorder %s77, 1
      %p415 = por %p413, %p414
      %p416 = scmp.ne.s32.totalorder %s407, %s408
      %p417 = scmp.eq.s32.totalorder %s77, 0
      %p418 = por %p416, %p417
      %p419 = scmp.ne.s32.totalorder %s407, %s408
      %p420 = scmp.eq.s32.totalorder %s78, 1
      %p421 = por %p419, %p420
      %p423 = scmp.ne.s32.totalorder %s408, %s422
      %p424 = scmp.eq.s32.totalorder %s78, 0
      %p425 = por %p423, %p424
      %s427 = sadd.s32 %s426, 1
      %p430 = scmp.eq.s32.totalorder %s72, 1
      %p431 = scmp.ne.s32.totalorder %s426, %s428
      %p432 = scmp.eq.s32.totalorder %s72, 0
      %p433 = por %p431, %p432
      %p434 = scmp.ne.s32.totalorder %s426, %s428
      %p435 = scmp.eq.s32.totalorder %s77, 1
      %p436 = por %p434, %p435
      %p437 = scmp.ne.s32.totalorder %s428, %s429
      %p438 = scmp.eq.s32.totalorder %s77, 0
      %p439 = por %p437, %p438
      %p440 = scmp.ne.s32.totalorder %s428, %s429
      %p441 = scmp.eq.s32.totalorder %s78, 1
      %p442 = por %p440, %p441
      %p444 = scmp.ne.s32.totalorder %s429, %s443
      %p445 = scmp.eq.s32.totalorder %s78, 0
      %p446 = por %p444, %p445
      %s448 = sadd.s32 %s447, 1
      %p451 = scmp.eq.s32.totalorder %s72, 1
      %p452 = scmp.ne.s32.totalorder %s447, %s449
      %p453 = scmp.eq.s32.totalorder %s72, 0
      %p454 = por %p452, %p453
      %p455 = scmp.ne.s32.totalorder %s447, %s449
      %p456 = scmp.eq.s32.totalorder %s77, 1
      %p457 = por %p455, %p456
      %p458 = scmp.ne.s32.totalorder %s449, %s450
      %p459 = scmp.eq.s32.totalorder %s77, 0
      %p460 = por %p458, %p459
      %p461 = scmp.ne.s32.totalorder %s449, %s450
      %p462 = scmp.eq.s32.totalorder %s78, 1
      %p463 = por %p461, %p462
      %p465 = scmp.ne.s32.totalorder %s450, %s464
      %p466 = scmp.eq.s32.totalorder %s78, 0
      %p467 = por %p465, %p466
      %s469 = sadd.s32 %s468, 1
      %p472 = scmp.eq.s32.totalorder %s72, 1
      %p473 = scmp.ne.s32.totalorder %s468, %s470
      %p474 = scmp.eq.s32.totalorder %s72, 0
      %p475 = por %p473, %p474
      %p476 = scmp.ne.s32.totalorder %s468, %s470
      %p477 = scmp.eq.s32.totalorder %s77, 1
      %p478 = por %p476, %p477
      %p479 = scmp.ne.s32.totalorder %s470, %s471
      %p480 = scmp.eq.s32.totalorder %s77, 0
      %p481 = por %p479, %p480
      %p482 = scmp.ne.s32.totalorder %s470, %s471
      %p483 = scmp.eq.s32.totalorder %s78, 1
      %p484 = por %p482, %p483
      %p486 = scmp.ne.s32.totalorder %s471, %s485
      %p487 = scmp.eq.s32.totalorder %s78, 0
      %p488 = por %p486, %p487
      %s490 = sadd.s32 %s489, 1
      %p493 = scmp.eq.s32.totalorder %s72, 1
      %p494 = scmp.ne.s32.totalorder %s489, %s491
      %p495 = scmp.eq.s32.totalorder %s72, 0
      %p496 = por %p494, %p495
      %p497 = scmp.ne.s32.totalorder %s489, %s491
      %p498 = scmp.eq.s32.totalorder %s77, 1
      %p499 = por %p497, %p498
      %p500 = scmp.ne.s32.totalorder %s491, %s492
      %p501 = scmp.eq.s32.totalorder %s77, 0
      %p502 = por %p500, %p501
      %p503 = scmp.ne.s32.totalorder %s491, %s492
      %p504 = scmp.eq.s32.totalorder %s78, 1
      %p505 = por %p503, %p504
      %p507 = scmp.ne.s32.totalorder %s492, %s506
      %p508 = scmp.eq.s32.totalorder %s78, 0
      %p509 = por %p507, %p508
      %s511 = sadd.s32 %s510, 1
      %p514 = scmp.eq.s32.totalorder %s72, 1
      %p515 = scmp.ne.s32.totalorder %s510, %s512
      %p516 = scmp.eq.s32.totalorder %s72, 0
      %p517 = por %p515, %p516
      %p518 = scmp.ne.s32.totalorder %s510, %s512
      %p519 = scmp.eq.s32.totalorder %s77, 1
      %p520 = por %p518, %p519
      %p521 = scmp.ne.s32.totalorder %s512, %s513
      %p522 = scmp.eq.s32.totalorder %s77, 0
      %p523 = por %p521, %p522
      %p524 = scmp.ne.s32.totalorder %s512, %s513
      %p525 = scmp.eq.s32.totalorder %s78, 1
      %p526 = por %p524, %p525
      %p528 = scmp.ne.s32.totalorder %s513, %s527
      %p529 = scmp.eq.s32.totalorder %s78, 0
      %p530 = por %p528, %p529
      %s532 = sadd.s32 %s531, 1
      %p535 = scmp.eq.s32.totalorder %s72, 1
      %p536 = scmp.ne.s32.totalorder %s531, %s533
      %p537 = scmp.eq.s32.totalorder %s72, 0
      %p538 = por %p536, %p537
      %p539 = scmp.ne.s32.totalorder %s531, %s533
      %p540 = scmp.eq.s32.totalorder %s77, 1
      %p541 = por %p539, %p540
      %p542 = scmp.ne.s32.totalorder %s533, %s534
      %p543 = scmp.eq.s32.totalorder %s77, 0
      %p544 = por %p542, %p543
      %p545 = scmp.ne.s32.totalorder %s533, %s534
      %p546 = scmp.eq.s32.totalorder %s78, 1
      %p547 = por %p545, %p546
      %p549 = scmp.ne.s32.totalorder %s534, %s548
      %p550 = scmp.eq.s32.totalorder %s78, 0
      %p551 = por %p549, %p550
      %s553 = sadd.s32 %s552, 1
      %p556 = scmp.eq.s32.totalorder %s72, 1
      %p557 = scmp.ne.s32.totalorder %s552, %s554
      %p558 = scmp.eq.s32.totalorder %s72, 0
      %p559 = por %p557, %p558
      %p560 = scmp.ne.s32.totalorder %s552, %s554
      %p561 = scmp.eq.s32.totalorder %s77, 1
      %p562 = por %p560, %p561
      %p563 = scmp.ne.s32.totalorder %s554, %s555
      %p564 = scmp.eq.s32.totalorder %s77, 0
      %p565 = por %p563, %p564
      %p566 = scmp.ne.s32.totalorder %s554, %s555
      %p567 = scmp.eq.s32.totalorder %s78, 1
      %p568 = por %p566, %p567
      %p570 = scmp.ne.s32.totalorder %s555, %s569
      %p571 = scmp.eq.s32.totalorder %s78, 0
      %p572 = por %p570, %p571
      %s574 = sadd.s32 %s573, 1
      %p577 = scmp.eq.s32.totalorder %s72, 1
      %p578 = scmp.ne.s32.totalorder %s573, %s575
      %p579 = scmp.eq.s32.totalorder %s72, 0
      %p580 = por %p578, %p579
      %p581 = scmp.ne.s32.totalorder %s573, %s575
      %p582 = scmp.eq.s32.totalorder %s77, 1
      %p583 = por %p581, %p582
      %p584 = scmp.ne.s32.totalorder %s575, %s576
      %p585 = scmp.eq.s32.totalorder %s77, 0
      %p586 = por %p584, %p585
      %p587 = scmp.ne.s32.totalorder %s575, %s576
      %p588 = scmp.eq.s32.totalorder %s78, 1
      %p589 = por %p587, %p588
      %p591 = scmp.ne.s32.totalorder %s576, %s590
      %p592 = scmp.eq.s32.totalorder %s78, 0
      %p593 = por %p591, %p592
      %s595 = sadd.s32 %s594, 1
      %p598 = scmp.eq.s32.totalorder %s72, 1
      %p599 = scmp.ne.s32.totalorder %s594, %s596
      %p600 = scmp.eq.s32.totalorder %s72, 0
      %p601 = por %p599, %p600
      %p602 = scmp.ne.s32.totalorder %s594, %s596
      %p603 = scmp.eq.s32.totalorder %s77, 1
      %p604 = por %p602, %p603
      %p605 = scmp.ne.s32.totalorder %s596, %s597
      %p606 = scmp.eq.s32.totalorder %s77, 0
      %p607 = por %p605, %p606
      %p608 = scmp.ne.s32.totalorder %s596, %s597
      %p609 = scmp.eq.s32.totalorder %s78, 1
      %p610 = por %p608, %p609
      %p612 = scmp.ne.s32.totalorder %s597, %s611
      %p613 = scmp.eq.s32.totalorder %s78, 0
      %p614 = por %p612, %p613
      %s616 = sadd.s32 %s615, 1
      %p619 = scmp.eq.s32.totalorder %s72, 1
      %p620 = scmp.ne.s32.totalorder %s615, %s617
      %p621 = scmp.eq.s32.totalorder %s72, 0
      %p622 = por %p620, %p621
      %p623 = scmp.ne.s32.totalorder %s615, %s617
      %p624 = scmp.eq.s32.totalorder %s77, 1
      %p625 = por %p623, %p624
      %p626 = scmp.ne.s32.totalorder %s617, %s618
      %p627 = scmp.eq.s32.totalorder %s77, 0
      %p628 = por %p626, %p627
      %p629 = scmp.ne.s32.totalorder %s617, %s618
      %p630 = scmp.eq.s32.totalorder %s78, 1
      %p631 = por %p629, %p630
      %p633 = scmp.ne.s32.totalorder %s618, %s632
      %p634 = scmp.eq.s32.totalorder %s78, 0
      %p635 = por %p633, %p634
      %s637 = sadd.s32 %s636, 1
      %p640 = scmp.eq.s32.totalorder %s72, 1
      %p641 = scmp.ne.s32.totalorder %s636, %s638
      %p642 = scmp.eq.s32.totalorder %s72, 0
      %p643 = por %p641, %p642
      %p644 = scmp.ne.s32.totalorder %s636, %s638
      %p645 = scmp.eq.s32.totalorder %s77, 1
      %p646 = por %p644, %p645
      %p647 = scmp.ne.s32.totalorder %s638, %s639
      %p648 = scmp.eq.s32.totalorder %s77, 0
      %p649 = por %p647, %p648
      %p650 = scmp.ne.s32.totalorder %s638, %s639
      %p651 = scmp.eq.s32.totalorder %s78, 1
      %p652 = por %p650, %p651
      %p654 = scmp.ne.s32.totalorder %s639, %s653
      %p655 = scmp.eq.s32.totalorder %s78, 0
      %p656 = por %p654, %p655
      %s658 = sadd.s32 %s657, 1
      %p661 = scmp.eq.s32.totalorder %s72, 1
      %p662 = scmp.ne.s32.totalorder %s657, %s659
      %p663 = scmp.eq.s32.totalorder %s72, 0
      %p664 = por %p662, %p663
      %p665 = scmp.ne.s32.totalorder %s657, %s659
      %p666 = scmp.eq.s32.totalorder %s77, 1
      %p667 = por %p665, %p666
      %p668 = scmp.ne.s32.totalorder %s659, %s660
      %p669 = scmp.eq.s32.totalorder %s77, 0
      %p670 = por %p668, %p669
      %p671 = scmp.ne.s32.totalorder %s659, %s660
      %p672 = scmp.eq.s32.totalorder %s78, 1
      %p673 = por %p671, %p672
      %p675 = scmp.ne.s32.totalorder %s660, %s674
      %p676 = scmp.eq.s32.totalorder %s78, 0
      %p677 = por %p675, %p676
      %s678 = ssub.s32 %s72, %s79
      %p679 = scmp.eq.s32.totalorder %s678, 0
      %s681 = sadd.s32 %s680, 1
      %s682 = scalar_select %p679, %s680, %s681
      %p685 = pneg %p679
      %p686 = scmp.eq.s32.totalorder %s72, 1
      %p687 = por %p685, %p686
      %p688 = scmp.ne.s32.totalorder %s680, %s683
      %p689 = scmp.eq.s32.totalorder %s72, 0
      %p690 = por %p688, %p689
      %p691 = scmp.ne.s32.totalorder %s680, %s683
      %p692 = scmp.eq.s32.totalorder %s77, 1
      %p693 = por %p691, %p692
      %p694 = scmp.ne.s32.totalorder %s683, %s684
      %p695 = scmp.eq.s32.totalorder %s77, 0
      %p696 = por %p694, %p695
      %p697 = scmp.ne.s32.totalorder %s683, %s684
      %p698 = scmp.eq.s32.totalorder %s78, 1
      %p699 = por %p697, %p698
      %p701 = scmp.ne.s32.totalorder %s684, %s700
      %p702 = scmp.eq.s32.totalorder %s78, 0
      %p703 = por %p701, %p702
      %s704 = ssub.s32 %s72, %s79
      %p705 = scmp.eq.s32.totalorder %s704, 0
      %s707 = sadd.s32 %s706, 1
      %s708 = scalar_select %p705, %s706, %s707
      %p711 = pneg %p705
      %p712 = scmp.eq.s32.totalorder %s72, 1
      %p713 = por %p711, %p712
      %p714 = scmp.ne.s32.totalorder %s706, %s709
      %p715 = scmp.eq.s32.totalorder %s72, 0
      %p716 = por %p714, %p715
      %p717 = scmp.ne.s32.totalorder %s706, %s709
      %p718 = scmp.eq.s32.totalorder %s77, 1
      %p719 = por %p717, %p718
      %p720 = scmp.ne.s32.totalorder %s709, %s710
      %p721 = scmp.eq.s32.totalorder %s77, 0
      %p722 = por %p720, %p721
      %p723 = scmp.ne.s32.totalorder %s709, %s710
      %p724 = scmp.eq.s32.totalorder %s78, 1
      %p725 = por %p723, %p724
      %p727 = scmp.ne.s32.totalorder %s710, %s726
      %p728 = scmp.eq.s32.totalorder %s78, 0
      %p729 = por %p727, %p728
      %p730 = scmp.le.s32.totalorder 1, %s72
      %p731 = scmp.lt.s32.totalorder %s72, 3
      %p732 = pnand %p730, %p731
      %p733 = pneg %p732
      // Predicated region
      $region9: #{tpu_custom_call.1} parent=5 // pred_check
        _
      $region10: #{tpu_custom_call.1} parent=5 // pred_check_branch
        %735 = sbr.rel (%p732) target = $region12
      $region11: #{tpu_custom_call.1} parent=5 // pred_region
        %s736 = ssub.s32 %s72, 1
        // Predicated region
        $region13: #{tpu_custom_call.1} parent=11 // pred_check
          %p737 = pneg %p145
        $region14: #{tpu_custom_call.1} parent=11 // pred_check_branch
          %739 = sbr.rel (%p737) target = $region16
        $region15: #{tpu_custom_call.1} parent=11 // pred_region
          _
        $region16: #{tpu_custom_call.1} parent=11 // pred_fallthru
          _
        // Predicated region
        $region17: #{tpu_custom_call.1} parent=11 // pred_check
          %p740 = pneg %p166
        $region18: #{tpu_custom_call.1} parent=11 // pred_check_branch
          %742 = sbr.rel (%p740) target = $region20
        $region19: #{tpu_custom_call.1} parent=11 // pred_region
          _
        $region20: #{tpu_custom_call.1} parent=11 // pred_fallthru
          _
        // Predicated region
        $region21: #{tpu_custom_call.1} parent=11 // pred_check
          %p743 = pneg %p187
        $region22: #{tpu_custom_call.1} parent=11 // pred_check_branch
          %745 = sbr.rel (%p743) target = $region24
        $region23: #{tpu_custom_call.1} parent=11 // pred_region
          _
        $region24: #{tpu_custom_call.1} parent=11 // pred_fallthru
          _
        // Predicated region
        $region25: #{tpu_custom_call.1} parent=11 // pred_check
          %p746 = pneg %p208
        $region26: #{tpu_custom_call.1} parent=11 // pred_check_branch
          %748 = sbr.rel (%p746) target = $region28
        $region27: #{tpu_custom_call.1} parent=11 // pred_region
          _
        $region28: #{tpu_custom_call.1} parent=11 // pred_fallthru
          _
        // Predicated region
        $region29: #{tpu_custom_call.1} parent=11 // pred_check
          %p749 = pneg %p229
        $region30: #{tpu_custom_call.1} parent=11 // pred_check_branch
          %751 = sbr.rel (%p749) target = $region32
        $region31: #{tpu_custom_call.1} parent=11 // pred_region
          _
        $region32: #{tpu_custom_call.1} parent=11 // pred_fallthru
          _
        // Predicated region
        $region33: #{tpu_custom_call.1} parent=11 // pred_check
          %p752 = pneg %p250
        $region34: #{tpu_custom_call.1} parent=11 // pred_check_branch
          %754 = sbr.rel (%p752) target = $region36
        $region35: #{tpu_custom_call.1} parent=11 // pred_region
          _
        $region36: #{tpu_custom_call.1} parent=11 // pred_fallthru
          _
        // Predicated region
        $region37: #{tpu_custom_call.1} parent=11 // pred_check
          %p755 = pneg %p271
        $region38: #{tpu_custom_call.1} parent=11 // pred_check_branch
          %757 = sbr.rel (%p755) target = $region40
        $region39: #{tpu_custom_call.1} parent=11 // pred_region
          _
        $region40: #{tpu_custom_call.1} parent=11 // pred_fallthru
          _
        // Predicated region
        $region41: #{tpu_custom_call.1} parent=11 // pred_check
          %p758 = pneg %p292
        $region42: #{tpu_custom_call.1} parent=11 // pred_check_branch
          %760 = sbr.rel (%p758) target = $region44
        $region43: #{tpu_custom_call.1} parent=11 // pred_region
          _
        $region44: #{tpu_custom_call.1} parent=11 // pred_fallthru
          _
        // Predicated region
        $region45: #{tpu_custom_call.1} parent=11 // pred_check
          %p761 = pneg %p313
        $region46: #{tpu_custom_call.1} parent=11 // pred_check_branch
          %763 = sbr.rel (%p761) target = $region48
        $region47: #{tpu_custom_call.1} parent=11 // pred_region
          _
        $region48: #{tpu_custom_call.1} parent=11 // pred_fallthru
          _
        // Predicated region
        $region49: #{tpu_custom_call.1} parent=11 // pred_check
          %p764 = pneg %p334
        $region50: #{tpu_custom_call.1} parent=11 // pred_check_branch
          %766 = sbr.rel (%p764) target = $region52
        $region51: #{tpu_custom_call.1} parent=11 // pred_region
          _
        $region52: #{tpu_custom_call.1} parent=11 // pred_fallthru
          _
        // Predicated region
        $region53: #{tpu_custom_call.1} parent=11 // pred_check
          %p767 = pneg %p355
        $region54: #{tpu_custom_call.1} parent=11 // pred_check_branch
          %769 = sbr.rel (%p767) target = $region56
        $region55: #{tpu_custom_call.1} parent=11 // pred_region
          _
        $region56: #{tpu_custom_call.1} parent=11 // pred_fallthru
          _
        // Predicated region
        $region57: #{tpu_custom_call.1} parent=11 // pred_check
          %p770 = pneg %p376
        $region58: #{tpu_custom_call.1} parent=11 // pred_check_branch
          %772 = sbr.rel (%p770) target = $region60
        $region59: #{tpu_custom_call.1} parent=11 // pred_region
          _
        $region60: #{tpu_custom_call.1} parent=11 // pred_fallthru
          _
        // Predicated region
        $region61: #{tpu_custom_call.1} parent=11 // pred_check
          %p773 = pneg %p397
        $region62: #{tpu_custom_call.1} parent=11 // pred_check_branch
          %775 = sbr.rel (%p773) target = $region64
        $region63: #{tpu_custom_call.1} parent=11 // pred_region
          _
        $region64: #{tpu_custom_call.1} parent=11 // pred_fallthru
          _
        // Predicated region
        $region65: #{tpu_custom_call.1} parent=11 // pred_check
          %p776 = pneg %p418
        $region66: #{tpu_custom_call.1} parent=11 // pred_check_branch
          %778 = sbr.rel (%p776) target = $region68
        $region67: #{tpu_custom_call.1} parent=11 // pred_region
          _
        $region68: #{tpu_custom_call.1} parent=11 // pred_fallthru
          _
        // Predicated region
        $region69: #{tpu_custom_call.1} parent=11 // pred_check
          %p779 = pneg %p439
        $region70: #{tpu_custom_call.1} parent=11 // pred_check_branch
          %781 = sbr.rel (%p779) target = $region72
        $region71: #{tpu_custom_call.1} parent=11 // pred_region
          _
        $region72: #{tpu_custom_call.1} parent=11 // pred_fallthru
          _
        // Predicated region
        $region73: #{tpu_custom_call.1} parent=11 // pred_check
          %p782 = pneg %p460
        $region74: #{tpu_custom_call.1} parent=11 // pred_check_branch
          %784 = sbr.rel (%p782) target = $region76
        $region75: #{tpu_custom_call.1} parent=11 // pred_region
          _
        $region76: #{tpu_custom_call.1} parent=11 // pred_fallthru
          _
        // Predicated region
        $region77: #{tpu_custom_call.1} parent=11 // pred_check
          %p785 = pneg %p481
        $region78: #{tpu_custom_call.1} parent=11 // pred_check_branch
          %787 = sbr.rel (%p785) target = $region80
        $region79: #{tpu_custom_call.1} parent=11 // pred_region
          _
        $region80: #{tpu_custom_call.1} parent=11 // pred_fallthru
          _
        // Predicated region
        $region81: #{tpu_custom_call.1} parent=11 // pred_check
          %p788 = pneg %p502
        $region82: #{tpu_custom_call.1} parent=11 // pred_check_branch
          %790 = sbr.rel (%p788) target = $region84
        $region83: #{tpu_custom_call.1} parent=11 // pred_region
          _
        $region84: #{tpu_custom_call.1} parent=11 // pred_fallthru
          _
        // Predicated region
        $region85: #{tpu_custom_call.1} parent=11 // pred_check
          %p791 = pneg %p523
        $region86: #{tpu_custom_call.1} parent=11 // pred_check_branch
          %793 = sbr.rel (%p791) target = $region88
        $region87: #{tpu_custom_call.1} parent=11 // pred_region
          _
        $region88: #{tpu_custom_call.1} parent=11 // pred_fallthru
          _
        // Predicated region
        $region89: #{tpu_custom_call.1} parent=11 // pred_check
          %p794 = pneg %p544
        $region90: #{tpu_custom_call.1} parent=11 // pred_check_branch
          %796 = sbr.rel (%p794) target = $region92
        $region91: #{tpu_custom_call.1} parent=11 // pred_region
          _
        $region92: #{tpu_custom_call.1} parent=11 // pred_fallthru
          _
        // Predicated region
        $region93: #{tpu_custom_call.1} parent=11 // pred_check
          %p797 = pneg %p565
        $region94: #{tpu_custom_call.1} parent=11 // pred_check_branch
          %799 = sbr.rel (%p797) target = $region96
        $region95: #{tpu_custom_call.1} parent=11 // pred_region
          _
        $region96: #{tpu_custom_call.1} parent=11 // pred_fallthru
          _
        // Predicated region
        $region97: #{tpu_custom_call.1} parent=11 // pred_check
          %p800 = pneg %p586
        $region98: #{tpu_custom_call.1} parent=11 // pred_check_branch
          %802 = sbr.rel (%p800) target = $region100
        $region99: #{tpu_custom_call.1} parent=11 // pred_region
          _
        $region100: #{tpu_custom_call.1} parent=11 // pred_fallthru
          _
        // Predicated region
        $region101: #{tpu_custom_call.1} parent=11 // pred_check
          %p803 = pneg %p607
        $region102: #{tpu_custom_call.1} parent=11 // pred_check_branch
          %805 = sbr.rel (%p803) target = $region104
        $region103: #{tpu_custom_call.1} parent=11 // pred_region
          _
        $region104: #{tpu_custom_call.1} parent=11 // pred_fallthru
          _
        // Predicated region
        $region105: #{tpu_custom_call.1} parent=11 // pred_check
          %p806 = pneg %p628
        $region106: #{tpu_custom_call.1} parent=11 // pred_check_branch
          %808 = sbr.rel (%p806) target = $region108
        $region107: #{tpu_custom_call.1} parent=11 // pred_region
          _
        $region108: #{tpu_custom_call.1} parent=11 // pred_fallthru
          _
        // Predicated region
        $region109: #{tpu_custom_call.1} parent=11 // pred_check
          %p809 = pneg %p649
        $region110: #{tpu_custom_call.1} parent=11 // pred_check_branch
          %811 = sbr.rel (%p809) target = $region112
        $region111: #{tpu_custom_call.1} parent=11 // pred_region
          _
        $region112: #{tpu_custom_call.1} parent=11 // pred_fallthru
          _
        // Predicated region
        $region113: #{tpu_custom_call.1} parent=11 // pred_check
          %p812 = pneg %p670
        $region114: #{tpu_custom_call.1} parent=11 // pred_check_branch
          %814 = sbr.rel (%p812) target = $region116
        $region115: #{tpu_custom_call.1} parent=11 // pred_region
          _
        $region116: #{tpu_custom_call.1} parent=11 // pred_fallthru
          _
      $region12: #{tpu_custom_call.1} parent=5 // pred_fallthru
        _
      %p815 = scmp.lt.s32.totalorder %s72, 2
      // Predicated region
      $region117: #{tpu_custom_call.1} parent=5 // pred_check
        %p816 = pneg %p815
      $region118: #{tpu_custom_call.1} parent=5 // pred_check_branch
        %818 = sbr.rel (%p816) target = $region120
      $region119: #{tpu_custom_call.1} parent=5 // pred_region
        // Predicated region
        $region121: #{tpu_custom_call.1} parent=119 // pred_check
          %p819 = pneg %p92
        $region122: #{tpu_custom_call.1} parent=119 // pred_check_branch
          %821 = sbr.rel (%p819) target = $region124
        $region123: #{tpu_custom_call.1} parent=119 // pred_region
          %p822 = scmp.lt.s32.totalorder %s72, 1
          %s823 = scalar_select %p822, %s72, 1
          %s824 = smul.addr %s823, 8
          %s825 = scalar_lea.vmem %s1, %s824
        $region124: #{tpu_custom_call.1} parent=119 // pred_fallthru
          _
        // Predicated region
        $region125: #{tpu_custom_call.1} parent=119 // pred_check
          %p826 = pneg %p118
        $region126: #{tpu_custom_call.1} parent=119 // pred_check_branch
          %828 = sbr.rel (%p826) target = $region128
        $region127: #{tpu_custom_call.1} parent=119 // pred_region
          %p829 = scmp.lt.s32.totalorder %s72, 1
          %s830 = scalar_select %p829, %s72, 1
          %s831 = scalar_lea.vmem %s3, %s830
        $region128: #{tpu_custom_call.1} parent=119 // pred_fallthru
          _
      $region120: #{tpu_custom_call.1} parent=5 // pred_fallthru
        _
      %p832 = scmp.le.s32.totalorder 1, %s72
      %p833 = scmp.lt.s32.totalorder %s72, 3
      %p834 = pnand %p832, %p833
      %p835 = pneg %p834
      // Predicated region
      $region129: #{tpu_custom_call.1} parent=5 // pred_check
        _
      $region130: #{tpu_custom_call.1} parent=5 // pred_check_branch
        %837 = sbr.rel (%p834) target = $region132
      $region131: #{tpu_custom_call.1} parent=5 // pred_region
        %s838 = ssub.s32 %s72, 1
        %p839 = scmp.lt.s32.totalorder %s77, 1
        %s840 = scalar_select %p839, %s77, 1
        %s841 = smul.addr %s840, 8
        %s842 = scalar_lea.vmem %s1, %s841
        %p843 = pneg %p98
        %p844 = pneg %p95
        %p845 = scmp.lt.s32.totalorder %s77, 1
        %s846 = scalar_select %p845, %s77, 1
        %s847 = scalar_lea.vmem %s3, %s846
        %p848 = pneg %p124
        %p849 = pneg %p121
        %p850 = pneg %p145
        %p851 = pneg %p142
        %p852 = pneg %p166
        %p853 = pneg %p163
        %p854 = pneg %p187
        %p855 = pneg %p184
        %p856 = pneg %p208
        %p857 = pneg %p205
        %p858 = pneg %p229
        %p859 = pneg %p226
        %p860 = pneg %p250
        %p861 = pneg %p247
        %p862 = pneg %p271
        %p863 = pneg %p268
        %p864 = pneg %p292
        %p865 = pneg %p289
        %p866 = pneg %p313
        %p867 = pneg %p310
        %p868 = pneg %p334
        %p869 = pneg %p331
        %p870 = pneg %p355
        %p871 = pneg %p352
        %p872 = pneg %p376
        %p873 = pneg %p373
        %p874 = pneg %p397
        %p875 = pneg %p394
        %p876 = pneg %p418
        %p877 = pneg %p415
        %p878 = pneg %p439
        %p879 = pneg %p436
        %p880 = pneg %p460
        %p881 = pneg %p457
        %p882 = pneg %p481
        %p883 = pneg %p478
        %p884 = pneg %p502
        %p885 = pneg %p499
        %p886 = pneg %p523
        %p887 = pneg %p520
        %p888 = pneg %p544
        %p889 = pneg %p541
        %p890 = pneg %p565
        %p891 = pneg %p562
        %p892 = pneg %p586
        %p893 = pneg %p583
        %p894 = pneg %p607
        %p895 = pneg %p604
        %p896 = pneg %p628
        %p897 = pneg %p625
        %p898 = pneg %p649
        %p899 = pneg %p646
        %p900 = pneg %p670
        %p901 = pneg %p667
        %p902 = pneg %p696
        %p903 = pneg %p693
        %s904 = sand.u32 %s683, 1
        %s905 = scalar_lea.sflag [#allocation4], %s904
        %s906 = sand.u32 %s683, 1
        %s907 = scalar_lea.vmem [#allocation3], %s906
        %p908 = pneg %p722
        %p909 = pneg %p719
        %s910 = sand.u32 %s709, 1
        %s911 = scalar_lea.sflag [#allocation6], %s910
        %s912 = sand.u32 %s709, 1
        %s913 = scalar_lea.vmem [#allocation5], %s912
        %p914 = scmp.lt.s32.totalorder %s77, 1
        %s915 = scalar_select %p914, %s77, 1
        %s916 = smul.addr %s915, 8
        %s917 = scalar_lea.vmem %s1, %s916
        %p918 = scmp.lt.s32.totalorder %s77, 1
        %s919 = scalar_select %p918, %s77, 1
        %s920 = scalar_lea.vmem %s3, %s919
        %vm922 = vcmask 261120
        %923 = vst.msk [vmem:[#allocation2] sm:$0xff] %vm922, 0.0
        %v924 = vld [vmem:[%s917] sm:$0xff]
        %vm925 = vcmask 130048
        %926 = vst.msk [vmem:[#allocation2 + $0x8] sm:$0xff] %vm925, %v924
        %v927 = vld [vmem:[#allocation2 + $0x7] sm:$0xff]
        %v928 = vld [vmem:[#allocation2 + $0x8] sm:$0xff]
        %930 = vrot.lane.b32.xlu0 %v928, 16
        %v931 = vpop.permute.xlu0 %930
        %v933 = vsel %vm925, %v927, %v931
        %v934 = vpack.c.bf16 %v933, %v933
        %v935 = vld [vmem:[%s5] sm:$0xf]
        %v936 = vld [vmem:[%s5 + $0x4] sm:$0xf]
        %v937 = vld [vmem:[%s5 + $0x8] sm:$0xf]
        %v938 = vld [vmem:[%s5 + $0xc] sm:$0xf]
        %v939 = vld [vmem:[%s7] sm:$0x1]
        %v941 = vperm.slane %v939, 0
        %v947 = vunpack.c.l.b16 %v935
        %v948 = vunpack.c.l.b16 %v936
        %v949 = vunpack.c.l.b16 %v937
        %v950 = vunpack.c.l.b16 %v938
        %v951 = vpack.c.b16 %v948, %v947
        %v952 = vpack.c.b16 %v950, %v949
        %v956 = vsel %vm922, %v934, 0
        %958 = vmatpush.bf16.msra.mxu0 0
        %959 = vmatpush.bf16.msra.mxu0 0
        %960 = vmatpush.bf16.msra.mxu0 0
        %961 = vmatpush.bf16.msra.mxu0 0
        %962 = vmatpush.bf16.msra.mxu0 0
        %963 = vmatpush.bf16.msra.mxu0 0
        %964 = vmatpush.bf16.msra.mxu0 %v952
        %965 = vmatpush.bf16.msra.mxu0 %v951
        %966 = vmatmul.bf16.gmra.mxu0 %v956
        %v967 = vpop.f32.mrf.mxu0
        %v968 = vadd.f32 %v941, %v967
        %v969 = vpop.f32.mrf.mxu0
        %970 = vdwg.mxu0
        %v971 = vmax.f32 %v968, 0.0
        %972 = vst.msk [vmem:[#allocation2 + $0x8] sm:$0xff] %vm922, %v971
        %v973 = vld [vmem:[#allocation2 + $0x7] sm:$0xff]
        %975 = vrot.lane.b32.xlu0 %v971, 32
        %v976 = vpop.permute.xlu0 %975
        %v978 = vsel %vm922, %v973, %v976
        %v979 = vpack.c.bf16 %v978, %v978
        %v980 = vld [vmem:[%s9] sm:$0xf]
        %v981 = vld [vmem:[%s9 + $0x4] sm:$0xf]
        %v982 = vld [vmem:[%s9 + $0x8] sm:$0xf]
        %v983 = vld [vmem:[%s9 + $0xc] sm:$0xf]
        %v984 = vld [vmem:[%s9 + $0x10] sm:$0xf]
        %v985 = vld [vmem:[%s9 + $0x14] sm:$0xf]
        %v986 = vld [vmem:[%s9 + $0x18] sm:$0xf]
        %v987 = vld [vmem:[%s9 + $0x1c] sm:$0xf]
        %v988 = vld [vmem:[%s11] sm:$0x1]
        %v990 = vperm.slane %v988, 0
        %v1000 = vunpack.c.l.b16 %v980
        %v1001 = vunpack.c.l.b16 %v981
        %v1002 = vunpack.c.l.b16 %v982
        %v1003 = vunpack.c.l.b16 %v983
        %v1004 = vunpack.c.l.b16 %v984
        %v1005 = vunpack.c.l.b16 %v985
        %v1006 = vunpack.c.l.b16 %v986
        %v1007 = vunpack.c.l.b16 %v987
        %v1008 = vpack.c.b16 %v1001, %v1000
        %v1009 = vpack.c.b16 %v1003, %v1002
        %v1010 = vpack.c.b16 %v1005, %v1004
        %v1011 = vpack.c.b16 %v1007, %v1006
        %vm1016 = vcmask 523264
        %v1018 = vsel %vm1016, %v979, 0
        %1020 = vmatpush.bf16.msra.mxu0 0
        %1021 = vmatpush.bf16.msra.mxu0 0
        %1022 = vmatpush.bf16.msra.mxu0 0
        %1023 = vmatpush.bf16.msra.mxu0 0
        %1024 = vmatpush.bf16.msra.mxu0 %v1011
        %1025 = vmatpush.bf16.msra.mxu0 %v1010
        %1026 = vmatpush.bf16.msra.mxu0 %v1009
        %1027 = vmatpush.bf16.msra.mxu0 %v1008
        %1028 = vmatmul.bf16.gmra.mxu0 %v1018
        %v1029 = vpop.f32.mrf.mxu0
        %v1030 = vadd.f32 %v990, %v1029
        %v1031 = vpop.f32.mrf.mxu0
        %1032 = vdwg.mxu0
        %v1033 = vmax.f32 %v1030, 0.0
        %v1034 = vpack.c.bf16 %v928, %v928
        %v1035 = vld [vmem:[%s13] sm:$0xf]
        %v1036 = vld [vmem:[%s13 + $0x4] sm:$0xf]
        %v1037 = vld [vmem:[%s15] sm:$0x1]
        %v1039 = vperm.slane %v1037, 0
        %v1043 = vunpack.c.l.b16 %v1035
        %v1044 = vunpack.c.l.b16 %v1036
        %v1045 = vpack.c.b16 %v1044, %v1043
        %v1048 = vsel %vm925, %v1034, 0
        %1050 = vmatpush.bf16.msra.mxu0 0
        %1051 = vmatpush.bf16.msra.mxu0 0
        %1052 = vmatpush.bf16.msra.mxu0 0
        %1053 = vmatpush.bf16.msra.mxu0 0
        %1054 = vmatpush.bf16.msra.mxu0 0
        %1055 = vmatpush.bf16.msra.mxu0 0
        %1056 = vmatpush.bf16.msra.mxu0 0
        %1057 = vmatpush.bf16.msra.mxu0 %v1045
        %1058 = vmatmul.bf16.gmra.mxu0 %v1048
        %v1059 = vpop.f32.mrf.mxu0
        %v1060 = vadd.f32 %v1039, %v1059
        %v1061 = vpop.f32.mrf.mxu0
        %1062 = vdwg.mxu0
        %v1063 = vadd.f32 %v1033, %v1060
        %v1064 = vmax.f32 %v1063, 0.0
        %1065 = vst.msk [vmem:[#allocation2 + $0x8] sm:$0xff] %vm922, %v1064
        %v1066 = vld [vmem:[#allocation2 + $0x6] sm:$0xff]
        %v1067 = vld [vmem:[#allocation2 + $0x8] sm:$0xff]
        %1069 = vrot.lane.b32.xlu0 %v1067, 32
        %v1070 = vpop.permute.xlu0 %1069
        %v1072 = vsel %vm922, %v1066, %v1070
        %v1073 = vpack.c.bf16 %v1072, %v1072
        %v1074 = vld [vmem:[%s17] sm:$0xf]
        %v1075 = vld [vmem:[%s17 + $0x4] sm:$0xf]
        %v1076 = vld [vmem:[%s17 + $0x8] sm:$0xf]
        %v1077 = vld [vmem:[%s17 + $0xc] sm:$0xf]
        %v1078 = vld [vmem:[%s17 + $0x10] sm:$0xf]
        %v1079 = vld [vmem:[%s17 + $0x14] sm:$0xf]
        %v1080 = vld [vmem:[%s17 + $0x18] sm:$0xf]
        %v1081 = vld [vmem:[%s17 + $0x1c] sm:$0xf]
        %v1082 = vld [vmem:[%s19] sm:$0x1]
        %v1084 = vperm.slane %v1082, 0
        %v1094 = vunpack.c.l.b16 %v1074
        %v1095 = vunpack.c.l.b16 %v1075
        %v1096 = vunpack.c.l.b16 %v1076
        %v1097 = vunpack.c.l.b16 %v1077
        %v1098 = vunpack.c.l.b16 %v1078
        %v1099 = vunpack.c.l.b16 %v1079
        %v1100 = vunpack.c.l.b16 %v1080
        %v1101 = vunpack.c.l.b16 %v1081
        %v1102 = vpack.c.b16 %v1095, %v1094
        %v1103 = vpack.c.b16 %v1097, %v1096
        %v1104 = vpack.c.b16 %v1099, %v1098
        %v1105 = vpack.c.b16 %v1101, %v1100
        %v1111 = vsel %vm1016, %v1073, 0
        %1113 = vmatpush.bf16.msra.mxu0 0
        %1114 = vmatpush.bf16.msra.mxu0 0
        %1115 = vmatpush.bf16.msra.mxu0 0
        %1116 = vmatpush.bf16.msra.mxu0 0
        %1117 = vmatpush.bf16.msra.mxu0 %v1105
        %1118 = vmatpush.bf16.msra.mxu0 %v1104
        %1119 = vmatpush.bf16.msra.mxu0 %v1103
        %1120 = vmatpush.bf16.msra.mxu0 %v1102
        %1121 = vmatmul.bf16.gmra.mxu0 %v1111
        %v1122 = vpop.f32.mrf.mxu0
        %v1123 = vadd.f32 %v1084, %v1122
        %v1124 = vpop.f32.mrf.mxu0
        %1125 = vdwg.mxu0
        %v1126 = vmax.f32 %v1123, 0.0
        %1127 = vst.msk [vmem:[#allocation2 + $0x8] sm:$0xff] %vm925, %v1126
        %v1128 = vld [vmem:[#allocation2 + $0x6] sm:$0xff]
        %1130 = vrot.lane.b32.xlu0 %v1126, 16
        %v1131 = vpop.permute.xlu0 %1130
        %v1133 = vsel %vm925, %v1128, %v1131
        %v1134 = vpack.c.bf16 %v1133, %v1133
        %v1135 = vld [vmem:[%s21] sm:$0xf]
        %v1136 = vld [vmem:[%s21 + $0x4] sm:$0xf]
        %v1137 = vld [vmem:[%s21 + $0x8] sm:$0xf]
        %v1138 = vld [vmem:[%s21 + $0xc] sm:$0xf]
        %v1139 = vld [vmem:[%s23] sm:$0x1]
        %v1141 = vperm.slane %v1139, 0
        %v1147 = vunpack.c.l.b16 %v1135
        %v1148 = vunpack.c.l.b16 %v1136
        %v1149 = vunpack.c.l.b16 %v1137
        %v1150 = vunpack.c.l.b16 %v1138
        %v1151 = vpack.c.b16 %v1148, %v1147
        %v1152 = vpack.c.b16 %v1150, %v1149
        %v1156 = vsel %vm922, %v1134, 0
        %1158 = vmatpush.bf16.msra.mxu0 0
        %1159 = vmatpush.bf16.msra.mxu0 0
        %1160 = vmatpush.bf16.msra.mxu0 0
        %1161 = vmatpush.bf16.msra.mxu0 0
        %1162 = vmatpush.bf16.msra.mxu0 0
        %1163 = vmatpush.bf16.msra.mxu0 0
        %1164 = vmatpush.bf16.msra.mxu0 %v1152
        %1165 = vmatpush.bf16.msra.mxu0 %v1151
        %1166 = vmatmul.bf16.gmra.mxu0 %v1156
        %v1167 = vpop.f32.mrf.mxu0
        %v1168 = vadd.f32 %v1141, %v1167
        %v1169 = vpop.f32.mrf.mxu0
        %1170 = vdwg.mxu0
        %v1171 = vmax.f32 %v1168, 0.0
        %v1172 = vpack.c.bf16 %v1067, %v1067
        %v1173 = vld [vmem:[%s25] sm:$0xf]
        %v1174 = vld [vmem:[%s25 + $0x4] sm:$0xf]
        %v1175 = vld [vmem:[%s25 + $0x8] sm:$0xf]
        %v1176 = vld [vmem:[%s25 + $0xc] sm:$0xf]
        %v1177 = vld [vmem:[%s27] sm:$0x1]
        %v1179 = vperm.slane %v1177, 0
        %v1185 = vunpack.c.l.b16 %v1173
        %v1186 = vunpack.c.l.b16 %v1174
        %v1187 = vunpack.c.l.b16 %v1175
        %v1188 = vunpack.c.l.b16 %v1176
        %v1189 = vpack.c.b16 %v1186, %v1185
        %v1190 = vpack.c.b16 %v1188, %v1187
        %v1194 = vsel %vm922, %v1172, 0
        %1196 = vmatpush.bf16.msra.mxu0 0
        %1197 = vmatpush.bf16.msra.mxu0 0
        %1198 = vmatpush.bf16.msra.mxu0 0
        %1199 = vmatpush.bf16.msra.mxu0 0
        %1200 = vmatpush.bf16.msra.mxu0 0
        %1201 = vmatpush.bf16.msra.mxu0 0
        %1202 = vmatpush.bf16.msra.mxu0 %v1190
        %1203 = vmatpush.bf16.msra.mxu0 %v1189
        %1204 = vmatmul.bf16.gmra.mxu0 %v1194
        %v1205 = vpop.f32.mrf.mxu0
        %v1206 = vadd.f32 %v1179, %v1205
        %v1207 = vpop.f32.mrf.mxu0
        %1208 = vdwg.mxu0
        %v1209 = vadd.f32 %v1171, %v1206
        %v1210 = vmax.f32 %v1209, 0.0
        %v1211 = vsel %vm925, %v1210, -inf
        %v1212 = vrot.slane %v1211, 4
        %v1213 = vmax.f32 %v1211, %v1212
        %v1214 = vrot.slane %v1213, 2
        %v1215 = vmax.f32 %v1213, %v1214
        %v1216 = vrot.slane %v1215, 1
        %v1217 = vmax.f32 %v1215, %v1216
        %v1218 = vld [vmem:[%s920] sm:$0x1]
        %v1219 = vpack.c.bf16 %v1218, %v1218
        %v1220 = vld [vmem:[%s29] sm:$0xf]
        %v1221 = vld [vmem:[%s29 + $0x4] sm:$0xf]
        %v1222 = vld [vmem:[%s31] sm:$0x1]
        %v1225 = vunpack.c.l.b16 %v1220
        %v1226 = vunpack.c.l.b16 %v1221
        %v1227 = vpack.c.b16 %v1226, %v1225
        %v1230 = vsel %vm925, %v1219, 0
        %1232 = vmatpush.bf16.msra.mxu0 0
        %1233 = vmatpush.bf16.msra.mxu0 0
        %1234 = vmatpush.bf16.msra.mxu0 0
        %1235 = vmatpush.bf16.msra.mxu0 0
        %1236 = vmatpush.bf16.msra.mxu0 0
        %1237 = vmatpush.bf16.msra.mxu0 0
        %1238 = vmatpush.bf16.msra.mxu0 0
        %1239 = vmatpush.bf16.msra.mxu0 %v1227
        %1240 = vmatmul.bf16.gmra.mxu0 %v1230
        %v1241 = vpop.f32.mrf.mxu0
        %v1242 = vadd.f32 %v1222, %v1241
        %v1243 = vpop.f32.mrf.mxu0
        %1244 = vdwg.mxu0
        %v1245 = vld [vmem:[%s33] sm:$0x1]
        %v1246 = vld [vmem:[%s35] sm:$0x1]
        %vm1247 = vcmask 122880
        %v1248 = vsel %vm1247, %v1242, 0.0
        %1249 = vadd.xlane.f32.xlu0 %v1248
        %v1250 = vpop.xlane.xlu0 %1249
        %v1251 = vrcp.pop 16.0
        %v1252 = vmul.f32 16.0, %v1251
        %v1253 = vsub.f32 1.0, %v1252
        %v1254 = vmul.f32 %v1251, %v1253
        %v1255 = vadd.f32 %v1251, %v1254
        %vm1256 = vweird.f32 %v1251
        %v1257 = vsel %vm1256, %v1251, %v1255
        %v1258 = vmul.f32 %v1250, %v1257
        %v1259 = vsub.f32 %v1242, %v1258
        %v1260 = vmul.f32 %v1259, %v1259
        %v1261 = vsel %vm1247, %v1260, 0.0
        %1262 = vadd.xlane.f32.xlu0 %v1261
        %v1263 = vpop.xlane.xlu0 %1262
        %v1264 = vmul.f32 %v1263, %v1257
        %v1265 = vadd.f32 %v1264, 1e-05
        %v1266 = vrsqrt.pop %v1265
        %v1267 = vmul.f32 %v1266, %v1265
        %v1268 = vmul.f32 %v1267, %v1266
        %v1269 = vmul.f32 0.5, %v1268
        %v1270 = vsub.f32 1.5, %v1269
        %v1271 = vmul.f32 %v1266, %v1270
        %vm1272 = vweird.f32 %v1265
        %vm1273 = vweird.f32 %v1266
        %vm1274 = vmor %vm1272, %vm1273
        %v1275 = vsel %vm1274, %v1266, %v1271
        %v1276 = vmul.f32 %v1259, %v1275
        %v1277 = vmul.f32 %v1276, %v1245
        %v1278 = vadd.f32 %v1277, %v1246
        %v1279 = vxor.u32 %v1278, 2147483648
        %v1280 = vmul.f32 %v1279, 1.442695
        %v1281 = vpow.pop %v1280
        %v1282 = vadd.f32 %v1281, 1.0
        %v1283 = vrcp.pop %v1282
        %v1284 = vmul.f32 %v1282, %v1283
        %v1285 = vsub.f32 1.0, %v1284
        %v1286 = vmul.f32 %v1283, %v1285
        %v1287 = vadd.f32 %v1283, %v1286
        %vm1288 = vweird.f32 %v1282
        %vm1289 = vweird.f32 %v1283
        %vm1290 = vmor %vm1288, %vm1289
        %v1291 = vsel %vm1290, %v1283, %v1287
        %v1292 = vand.u32 2147483647, %v1282
        %vm1293 = vcmp.eq.f32.partialorder %v1292, 8.507059e+37
        %v1294 = vand.u32 %v1282, 2147483648
        %v1295 = vor.u32 1.1754944e-38, %v1294
        %v1296 = vsel %vm1293, %v1295, %v1291
        %v1297 = vmul.f32 1.0, %v1296
        %v1298 = vmul.f32 %v1278, %v1297
        %1300 = vrot.lane.b32.xlu0 %v1298, 16
        %v1301 = vpop.permute.xlu0 %1300
        %v1303 = vsel %vm925, %v1217, %v1301
        %v1304 = vpack.c.bf16 %v1303, %v1303
        %v1305 = vld [vmem:[%s37] sm:$0xf]
        %v1306 = vld [vmem:[%s37 + $0x4] sm:$0xf]
        %v1307 = vld [vmem:[%s37 + $0x8] sm:$0xf]
        %v1308 = vld [vmem:[%s37 + $0xc] sm:$0xf]
        %v1309 = vld [vmem:[%s39] sm:$0x1]
        %v1314 = vunpack.c.l.b16 %v1305
        %v1315 = vunpack.c.l.b16 %v1306
        %v1316 = vunpack.c.l.b16 %v1307
        %v1317 = vunpack.c.l.b16 %v1308
        %v1318 = vpack.c.b16 %v1315, %v1314
        %v1319 = vpack.c.b16 %v1317, %v1316
        %v1323 = vsel %vm922, %v1304, 0
        %1325 = vmatpush.bf16.msra.mxu0 0
        %1326 = vmatpush.bf16.msra.mxu0 0
        %1327 = vmatpush.bf16.msra.mxu0 0
        %1328 = vmatpush.bf16.msra.mxu0 0
        %1329 = vmatpush.bf16.msra.mxu0 0
        %1330 = vmatpush.bf16.msra.mxu0 0
        %1331 = vmatpush.bf16.msra.mxu0 %v1319
        %1332 = vmatpush.bf16.msra.mxu0 %v1318
        %1333 = vmatmul.bf16.gmra.mxu0 %v1323
        %v1334 = vpop.f32.mrf.mxu0
        %v1335 = vadd.f32 %v1309, %v1334
        %v1336 = vpop.f32.mrf.mxu0
        %1337 = vdwg.mxu0
        %v1338 = vld [vmem:[%s41] sm:$0x1]
        %v1339 = vld [vmem:[%s43] sm:$0x1]
        %v1340 = vsel %vm1247, %v1335, 0.0
        %1341 = vadd.xlane.f32.xlu0 %v1340
        %v1342 = vpop.xlane.xlu0 %1341
        %v1343 = vmul.f32 %v1342, %v1257
        %v1344 = vsub.f32 %v1335, %v1343
        %v1345 = vmul.f32 %v1344, %v1344
        %v1346 = vsel %vm1247, %v1345, 0.0
        %1347 = vadd.xlane.f32.xlu0 %v1346
        %v1348 = vpop.xlane.xlu0 %1347
        %v1349 = vmul.f32 %v1348, %v1257
        %v1350 = vadd.f32 %v1349, 1e-05
        %v1351 = vrsqrt.pop %v1350
        %v1352 = vmul.f32 %v1351, %v1350
        %v1353 = vmul.f32 %v1352, %v1351
        %v1354 = vmul.f32 0.5, %v1353
        %v1355 = vsub.f32 1.5, %v1354
        %v1356 = vmul.f32 %v1351, %v1355
        %vm1357 = vweird.f32 %v1350
        %vm1358 = vweird.f32 %v1351
        %vm1359 = vmor %vm1357, %vm1358
        %v1360 = vsel %vm1359, %v1351, %v1356
        %v1361 = vmul.f32 %v1344, %v1360
        %v1362 = vmul.f32 %v1361, %v1338
        %v1363 = vadd.f32 %v1362, %v1339
        %v1364 = vxor.u32 %v1363, 2147483648
        %v1365 = vmul.f32 %v1364, 1.442695
        %v1366 = vpow.pop %v1365
        %v1367 = vadd.f32 %v1366, 1.0
        %v1368 = vrcp.pop %v1367
        %v1369 = vmul.f32 %v1367, %v1368
        %v1370 = vsub.f32 1.0, %v1369
        %v1371 = vmul.f32 %v1368, %v1370
        %v1372 = vadd.f32 %v1368, %v1371
        %vm1373 = vweird.f32 %v1367
        %vm1374 = vweird.f32 %v1368
        %vm1375 = vmor %vm1373, %vm1374
        %v1376 = vsel %vm1375, %v1368, %v1372
        %v1377 = vand.u32 2147483647, %v1367
        %vm1378 = vcmp.eq.f32.partialorder %v1377, 8.507059e+37
        %v1379 = vand.u32 %v1367, 2147483648
        %v1380 = vor.u32 1.1754944e-38, %v1379
        %v1381 = vsel %vm1378, %v1380, %v1376
        %v1382 = vmul.f32 1.0, %v1381
        %v1383 = vmul.f32 %v1363, %v1382
        %v1384 = vld [vmem:[%s45] sm:$0x1]
        %v1385 = vld [vmem:[%s47] sm:$0x1]
        %1387 = vrot.lane.b32.xlu0 %v1335, 112
        %v1388 = vpop.permute.xlu0 %1387
        %v1390 = vsel %vm1247, %v1388, 0.0
        %1391 = vadd.xlane.f32.xlu0 %v1390
        %v1392 = vpop.xlane.xlu0 %1391
        %v1393 = vmul.f32 %v1392, %v1257
        %v1394 = vsub.f32 %v1335, %v1393
        %v1395 = vmul.f32 %v1394, %v1394
        %1397 = vrot.lane.b32.xlu0 %v1395, 112
        %v1398 = vpop.permute.xlu0 %1397
        %v1400 = vsel %vm1247, %v1398, 0.0
        %1401 = vadd.xlane.f32.xlu0 %v1400
        %v1402 = vpop.xlane.xlu0 %1401
        %v1403 = vmul.f32 %v1402, %v1257
        %v1404 = vadd.f32 %v1403, 1e-05
        %v1405 = vrsqrt.pop %v1404
        %v1406 = vmul.f32 %v1405, %v1404
        %v1407 = vmul.f32 %v1406, %v1405
        %v1408 = vmul.f32 0.5, %v1407
        %v1409 = vsub.f32 1.5, %v1408
        %v1410 = vmul.f32 %v1405, %v1409
        %vm1411 = vweird.f32 %v1404
        %vm1412 = vweird.f32 %v1405
        %vm1413 = vmor %vm1411, %vm1412
        %v1414 = vsel %vm1413, %v1405, %v1410
        %v1415 = vmul.f32 %v1394, %v1414
        %v1417 = vperm.slane %v1384, 0
        %1418 = vrot.lane.b32.xlu0 %v1417, 16
        %v1419 = vpop.permute.xlu0 %1418
        %v1421 = vmul.f32 %v1415, %v1419
        %v1423 = vperm.slane %v1385, 0
        %1424 = vrot.lane.b32.xlu0 %v1423, 16
        %v1425 = vpop.permute.xlu0 %1424
        %v1427 = vadd.f32 %v1421, %v1425
        %v1428 = vxor.u32 %v1427, 2147483648
        %v1429 = vmul.f32 %v1428, 1.442695
        %v1430 = vpow.pop %v1429
        %v1431 = vadd.f32 %v1430, 1.0
        %v1432 = vrcp.pop %v1431
        %v1433 = vmul.f32 %v1431, %v1432
        %v1434 = vsub.f32 1.0, %v1433
        %v1435 = vmul.f32 %v1432, %v1434
        %v1436 = vadd.f32 %v1432, %v1435
        %vm1437 = vweird.f32 %v1431
        %vm1438 = vweird.f32 %v1432
        %vm1439 = vmor %vm1437, %vm1438
        %v1440 = vsel %vm1439, %v1432, %v1436
        %v1441 = vand.u32 2147483647, %v1431
        %vm1442 = vcmp.eq.f32.partialorder %v1441, 8.507059e+37
        %v1443 = vand.u32 %v1431, 2147483648
        %v1444 = vor.u32 1.1754944e-38, %v1443
        %v1445 = vsel %vm1442, %v1444, %v1440
        %v1446 = vmul.f32 1.0, %v1445
        %v1447 = vmul.f32 %v1427, %v1446
        %v1448 = vpack.c.bf16 %v1383, %v1383
        %v1449 = vld [vmem:[%s49] sm:$0xf]
        %v1450 = vld [vmem:[%s49 + $0x4] sm:$0xf]
        %v1451 = vld [vmem:[%s51] sm:$0x1]
        %v1454 = vunpack.c.l.b16 %v1449
        %v1455 = vunpack.c.l.b16 %v1450
        %v1456 = vpack.c.b16 %v1455, %v1454
        %v1459 = vsel %vm925, %v1448, 0
        %1461 = vmatpush.bf16.msra.mxu0 0
        %1462 = vmatpush.bf16.msra.mxu0 0
        %1463 = vmatpush.bf16.msra.mxu0 0
        %1464 = vmatpush.bf16.msra.mxu0 0
        %1465 = vmatpush.bf16.msra.mxu0 0
        %1466 = vmatpush.bf16.msra.mxu0 0
        %1467 = vmatpush.bf16.msra.mxu0 0
        %1468 = vmatpush.bf16.msra.mxu0 %v1456
        %1469 = vmatmul.bf16.gmra.mxu0 %v1459
        %v1470 = vpop.f32.mrf.mxu0
        %v1471 = vadd.f32 %v1451, %v1470
        %v1472 = vpop.f32.mrf.mxu0
        %1473 = vdwg.mxu0
        %v1474 = vxor.u32 %v1471, 2147483648
        %v1475 = vmul.f32 %v1474, 1.442695
        %v1476 = vpow.pop %v1475
        %v1477 = vadd.f32 %v1476, 1.0
        %v1478 = vrcp.pop %v1477
        %v1479 = vmul.f32 %v1477, %v1478
        %v1480 = vsub.f32 1.0, %v1479
        %v1481 = vmul.f32 %v1478, %v1480
        %v1482 = vadd.f32 %v1478, %v1481
        %vm1483 = vweird.f32 %v1477
        %vm1484 = vweird.f32 %v1478
        %vm1485 = vmor %vm1483, %vm1484
        %v1486 = vsel %vm1485, %v1478, %v1482
        %v1487 = vand.u32 2147483647, %v1477
        %vm1488 = vcmp.eq.f32.partialorder %v1487, 8.507059e+37
        %v1489 = vand.u32 %v1477, 2147483648
        %v1490 = vor.u32 1.1754944e-38, %v1489
        %v1491 = vsel %vm1488, %v1490, %v1486
        %v1492 = vmul.f32 1.0, %v1491
        %1493 = vst.msk [vmem:[%s907] sm:$0x1] %vm1247, %v1492
        %v1494 = vpack.c.bf16 %v1447, %v1447
        %v1495 = vld [vmem:[%s53] sm:$0xf]
        %v1496 = vld [vmem:[%s53 + $0x4] sm:$0xf]
        %v1497 = vld [vmem:[%s55] sm:$0x1]
        %1499 = vrot.lane.b32.xlu0 %v1494, 112
        %v1500 = vpop.permute.xlu0 %1499
        %v1503 = vunpack.c.l.b16 %v1495
        %v1504 = vunpack.c.l.b16 %v1496
        %v1505 = vpack.c.b16 %v1504, %v1503
        %v1508 = vsel %vm925, %v1500, 0
        %1510 = vmatpush.bf16.msra.mxu0 0
        %1511 = vmatpush.bf16.msra.mxu0 0
        %1512 = vmatpush.bf16.msra.mxu0 0
        %1513 = vmatpush.bf16.msra.mxu0 0
        %1514 = vmatpush.bf16.msra.mxu0 0
        %1515 = vmatpush.bf16.msra.mxu0 0
        %1516 = vmatpush.bf16.msra.mxu0 0
        %1517 = vmatpush.bf16.msra.mxu0 %v1505
        %1518 = vmatmul.bf16.gmra.mxu0 %v1508
        %v1519 = vpop.f32.mrf.mxu0
        %v1520 = vadd.f32 %v1497, %v1519
        %v1521 = vpop.f32.mrf.mxu0
        %1522 = vdwg.mxu0
        %v1523 = vsel %vm1247, %v1520, -inf
        %1524 = vmax.xlane.f32.xlu0 %v1523
        %v1525 = vpop.xlane.xlu0 %1524
        %v1526 = vsub.f32 %v1520, %v1525
        %v1527 = vmul.f32 %v1526, 1.442695
        %v1528 = vpow.pop %v1527
        %v1529 = vsel %vm1247, %v1528, 0.0
        %1530 = vadd.xlane.f32.xlu0 %v1529
        %v1531 = vpop.xlane.xlu0 %1530
        %v1532 = vrcp.pop %v1531
        %v1533 = vmul.f32 %v1528, %v1532
        %1534 = vst.msk [vmem:[%s913] sm:$0x1] %vm1247, %v1533
        %s1535 = sand.u32 %s683, 1
        %s1536 = scalar_lea.sflag [#allocation4], %s1535
        %s1537 = sand.u32 %s683, 1
        %s1538 = scalar_lea.vmem [#allocation3], %s1537
        %s1539 = sand.u32 %s709, 1
        %s1540 = scalar_lea.sflag [#allocation6], %s1539
        %s1541 = sand.u32 %s709, 1
        %s1542 = scalar_lea.vmem [#allocation5], %s1541
        // Predicated region
        $region133: #{tpu_custom_call.1} parent=131 // pred_check
          %p1543 = pneg %p693
        $region134: #{tpu_custom_call.1} parent=131 // pred_check_branch
          %1545 = sbr.rel (%p1543) target = $region136
        $region135: #{tpu_custom_call.1} parent=131 // pred_region
          %1547 = vsyncadd %s1536, 0
          %s1548 = scalar_lea.hbm %s57, %s77
          %s1550 = sshll.u32 %s1538, 4
          %s1551 = int_to_ptr.vmem [resolvable:$true] %s1550
          %s1552 = sshll.u32 %s1548, 4
          %s1553 = int_to_ptr.hbm [resolvable:$true] %s1552
          %1555 = dma.vmem_to_hbm [thread:$0]  %s1551, 16, %s1553, %s1536
        $region136: #{tpu_custom_call.1} parent=131 // pred_fallthru
          _
        // Predicated region
        $region137: #{tpu_custom_call.1} parent=131 // pred_check
          %p1556 = pneg %p719
        $region138: #{tpu_custom_call.1} parent=131 // pred_check_branch
          %1558 = sbr.rel (%p1556) target = $region140
        $region139: #{tpu_custom_call.1} parent=131 // pred_region
          %1560 = vsyncadd %s1540, 0
          %s1561 = scalar_lea.hbm %s59, %s77
          %s1563 = sshll.u32 %s1542, 4
          %s1564 = int_to_ptr.vmem [resolvable:$true] %s1563
          %s1565 = sshll.u32 %s1561, 4
          %s1566 = int_to_ptr.hbm [resolvable:$true] %s1565
          %1568 = dma.vmem_to_hbm [thread:$0]  %s1564, 16, %s1566, %s1540
        $region140: #{tpu_custom_call.1} parent=131 // pred_fallthru
          _
      $region132: #{tpu_custom_call.1} parent=5 // pred_fallthru
        _
      %p1569 = scmp.le.s32.totalorder 2, %s72
      // Predicated region
      $region141: #{tpu_custom_call.1} parent=5 // pred_check
        %p1570 = pneg %p1569
      $region142: #{tpu_custom_call.1} parent=5 // pred_check_branch
        %1572 = sbr.rel (%p1570) target = $region144
      $region143: #{tpu_custom_call.1} parent=5 // pred_region
        %s1573 = ssub.s32 %s72, 2
        // Predicated region
        $region145: #{tpu_custom_call.1} parent=143 // pred_check
          %p1574 = pneg %p699
        $region146: #{tpu_custom_call.1} parent=143 // pred_check_branch
          %1576 = sbr.rel (%p1574) target = $region148
        $region147: #{tpu_custom_call.1} parent=143 // pred_region
          %s1577 = sand.u32 %s684, 1
          %s1578 = scalar_lea.sflag [#allocation4], %s1577
          %s1579 = sand.u32 %s684, 1
          %s1580 = scalar_lea.vmem [#allocation3], %s1579
          %1582 = dma.done %s1578, 16
        $region148: #{tpu_custom_call.1} parent=143 // pred_fallthru
          _
        // Predicated region
        $region149: #{tpu_custom_call.1} parent=143 // pred_check
          %p1583 = pneg %p725
        $region150: #{tpu_custom_call.1} parent=143 // pred_check_branch
          %1585 = sbr.rel (%p1583) target = $region152
        $region151: #{tpu_custom_call.1} parent=143 // pred_region
          %s1586 = sand.u32 %s710, 1
          %s1587 = scalar_lea.sflag [#allocation6], %s1586
          %s1588 = sand.u32 %s710, 1
          %s1589 = scalar_lea.vmem [#allocation5], %s1588
          %1591 = dma.done %s1587, 16
        $region152: #{tpu_custom_call.1} parent=143 // pred_fallthru
          _
      $region144: #{tpu_custom_call.1} parent=5 // pred_fallthru
        _
    $region6: #{tpu_custom_call.1} parent=1 // loop_footer
      %s76 = sadd.s32 1, %s72
    $region7: #{tpu_custom_call.1} parent=1 // loop_footer_branch
      %71 = sbr.rel target = $region3
    $region8: #{tpu_custom_call.1} parent=1 // loop_exit
      _
    %1592 = vsyncpa [#allocation4], 1
    %s1593 = scalar_lea.sflag [#allocation4], 1
    %1594 = vsyncpa %s1593, 1
    %1595 = vsyncpa [#allocation6], 1
    %s1596 = scalar_lea.sflag [#allocation6], 1
    %1597 = vsyncpa %s1596, 1

</llo_original>
